<compile_context>
chip_gen: v6e
topology: v6e:2x2x1
jax: 0.10.0
libtpu: 0.0.40
codegen_flags: <defaults>
</compile_context>

<pallas_src>
import functools

import jax
import jax.numpy as jnp
from jax.experimental import pallas as pl
from jax.experimental.pallas import tpu as pltpu

_ACT_DTYPE = jnp.bfloat16                      # matmul operands / stored activations
_VMEM_LIMIT_BYTES = 48 * 1024 * 1024           # raises v5e 16 MiB default, < v7x 64 MiB
_LAYER_CFG = ((64, 3, 1), (128, 8, 2), (256, 36, 2), (512, 3, 2))   # resnet152


# ----------------------------------------------------------------------------
# Pallas kernels
# ----------------------------------------------------------------------------
def _mm_affine_kernel(a_ref, b_ref, scale_ref, shift_ref, o_ref, acc_ref,
                      *, apply_relu):
    """out = [relu](A @ B * scale + shift); K-reduction over grid axis 2 (usually 1 step)."""
    k = pl.program_id(2)

    @pl.when(k == 0)
    def _():
        acc_ref[...] = jnp.zeros_like(acc_ref)

    acc_ref[...] += jnp.dot(a_ref[...], b_ref[...],
                            preferred_element_type=jnp.float32)

    @pl.when(k == pl.num_programs(2) - 1)
    def _():
        out = acc_ref[...] * scale_ref[...] + shift_ref[...]
        if apply_relu:
            out = jnp.maximum(out, 0.0)
        o_ref[...] = out.astype(o_ref.dtype)


def _mm_affine_res_kernel(a_ref, b_ref, scale_ref, shift_ref, res_ref,
                          o_ref, acc_ref, *, apply_relu):
    """out = [relu](A @ B * scale + shift + residual)  (Bottleneck tail fusion)."""
    k = pl.program_id(2)

    @pl.when(k == 0)
    def _():
        acc_ref[...] = jnp.zeros_like(acc_ref)

    acc_ref[...] += jnp.dot(a_ref[...], b_ref[...],
                            preferred_element_type=jnp.float32)

    @pl.when(k == pl.num_programs(2) - 1)
    def _():
        out = (acc_ref[...] * scale_ref[...] + shift_ref[...]
               + res_ref[...].astype(jnp.float32))
        if apply_relu:
            out = jnp.maximum(out, 0.0)
        o_ref[...] = out.astype(o_ref.dtype)


def _maxpool_kernel(x_ref, o_ref):
    # x_ref: [9, tr, C] window taps; elementwise max over the tap axis.
    o_ref[...] = jnp.max(x_ref[...], axis=0)


# ----------------------------------------------------------------------------
# Tile selection (exact-fit K, wide lane-dense N, >=2 parallel blocks for v7x)
# ----------------------------------------------------------------------------
def _round_up(x, m):
    return (x + m - 1) // m * m


def _pick_tm(m):
    if m <= 256:
        return m                              # full-M block (equals array dim -> legal)
    for tm in (256, 128, 64, 32, 16, 8):
        if m % tm == 0:
            return tm
    return 256                                # falls back to M padding (never hit here)


def _pick_tn(m_blocks, n, small_m):
    # 256/512-wide tiles feed the full 256-wide MXU on v6e/v7x and give unmasked
    # lane-dense stores; on v5e a 256 tile is just two MXU passes (still fewer
    # grid steps).  Keep >= 2 parallel blocks so both v7x TensorCores get work.
    cands = (512, 256, 128) if small_m else (256, 128)
    for tn in cands:
        if n % tn == 0 and (m_blocks >= 2 or n // tn >= 2):
            return tn
    for tn in (256, 128):
        if n % tn == 0:
            return tn
    return n                                  # n < 128: full-dim block (tiny layers only)


def _pick_tk(k, tm, tn):
    # Exact-fit K: whole reduction in one step whenever the bf16 A/B tiles fit
    # comfortably in VMEM (true for every resnet152 conv, K <= 4608).
    budget = 6 * 1024 * 1024                  # per-buffer bytes for A+B tiles
    if (tm + tn) * k * 2 <= budget:
        return k, k
    kp = _round_up(k, 128)
    tk, t = 128, 128
    while t <= kp:
        if kp % t == 0 and (tm + tn) * t * 2 <= budget:
            tk = t
        t += 128
    return tk, kp


# ----------------------------------------------------------------------------
# Pallas matmul wrapper (fused BN affine / residual / ReLU epilogue)
# ----------------------------------------------------------------------------
def _mm_call(kernel, apply_relu, a, b, scale, shift, res=None):
    m, k = a.shape
    n = b.shape[1]

    tm = _pick_tm(m)
    mp = _round_up(m, tm)
    m_blocks = mp // tm
    tn = _pick_tn(m_blocks, n, small_m=(m <= 64))
    tk, kp = _pick_tk(k, tm, tn)

    # v7x has 2 TensorCores: keep >= 2 parallel blocks when it is free to do so.
    if m_blocks * (n // tn) == 1 and m >= 16 and m % 16 == 0:
        tm = m // 2
        mp, m_blocks = m, 2

    # Padding paths are dormant for resnet152 shapes (M = N*Ho*Wo tiles exactly,
    # K is exact-fit, N is a tile multiple or < 128) -> no extra HBM copies.
    if mp != m:
        a = jnp.pad(a, ((0, mp - m), (0, 0)))
        if res is not None:
            res = jnp.pad(res, ((0, mp - m), (0, 0)))
    if kp != k:
        a = jnp.pad(a, ((0, 0), (0, kp - k)))
        b = jnp.pad(b, ((0, kp - k), (0, 0)))

    in_specs = [
        pl.BlockSpec((tm, tk), lambda i, j, kk: (i, kk)),
        pl.BlockSpec((tk, tn), lambda i, j, kk: (kk, j)),
        pl.BlockSpec((1, tn), lambda i, j, kk: (0, j)),
        pl.BlockSpec((1, tn), lambda i, j, kk: (0, j)),
    ]
    args = [a, b, scale, shift]
    if res is not None:
        in_specs.append(pl.BlockSpec((tm, tn), lambda i, j, kk: (i, j)))
        args.append(res)

    itemsize = jnp.dtype(_ACT_DTYPE).itemsize
    bytes_accessed = int(mp * kp + kp * n + mp * n) * itemsize + 2 * n * 4
    if res is not None:
        bytes_accessed += int(mp * n) * itemsize
    cost = pl.CostEstimate(flops=2 * int(m) * int(k) * int(n),
                           transcendentals=0,
                           bytes_accessed=bytes_accessed)

    out = pl.pallas_call(
        functools.partial(kernel, apply_relu=apply_relu),
        out_shape=jax.ShapeDtypeStruct((mp, n), _ACT_DTYPE),
        grid_spec=pltpu.PrefetchScalarGridSpec(
            num_scalar_prefetch=0,
            grid=(m_blocks, n // tn, kp // tk),
            in_specs=in_specs,
            out_specs=pl.BlockSpec((tm, tn), lambda i, j, kk: (i, j)),
            scratch_shapes=[pltpu.VMEM((tm, tn), jnp.float32)],
        ),
        compiler_params=pltpu.CompilerParams(
            dimension_semantics=("parallel", "parallel", "arbitrary"),
            vmem_limit_bytes=_VMEM_LIMIT_BYTES),
        cost_estimate=cost,
    )(*args)
    return out if mp == m else out[:m]


def _matmul_affine(a, b, scale, shift, apply_relu):
    return _mm_call(_mm_affine_kernel, apply_relu, a, b, scale, shift)


def _matmul_affine_res(a, b, scale, shift, res, apply_relu):
    return _mm_call(_mm_affine_res_kernel, apply_relu, a, b, scale, shift, res)


def _maxpool_rows(windows):
    """windows: [9, R, C] bf16 -> [R, C] elementwise max over the 9 taps."""
    kk, r, c = windows.shape
    folded = (c < 128) and ((r * c) % 128 == 0)
    if folded:                                 # lane-dense: 128-wide unmasked stores
        windows = windows.reshape(kk, (r * c) // 128, 128)
    _, rows, cols = windows.shape
    tr = rows if rows <= 1024 else 512
    rp = _round_up(rows, tr)
    if rp != rows:
        windows = jnp.pad(windows, ((0, 0), (0, rp - rows), (0, 0)),
                          constant_values=-jnp.inf)
    out = pl.pallas_call(
        _maxpool_kernel,
        out_shape=jax.ShapeDtypeStruct((rp, cols), windows.dtype),
        grid_spec=pltpu.PrefetchScalarGridSpec(
            num_scalar_prefetch=0,
            grid=(rp // tr,),
            in_specs=[pl.BlockSpec((kk, tr, cols), lambda i: (0, i, 0))],
            out_specs=pl.BlockSpec((tr, cols), lambda i: (i, 0)),
        ),
        compiler_params=pltpu.CompilerParams(
            dimension_semantics=("parallel",),
            vmem_limit_bytes=_VMEM_LIMIT_BYTES),
    )(windows)
    out = out[:rows]
    if folded:
        out = out.reshape(r, c)
    return out


# ----------------------------------------------------------------------------
# Conv / pooling glue (im2col in bf16 XLA, matmul + BN/ReLU/residual in Pallas)
# ----------------------------------------------------------------------------
def _im2col(x, kh, kw, stride, pad):
    n, h, w, c = x.shape
    xp = jnp.pad(x, ((0, 0), (pad, pad), (pad, pad), (0, 0)))
    ho = (h + 2 * pad - kh) // stride + 1
    wo = (w + 2 * pad - kw) // stride + 1
    cols = []
    for i in range(kh):
        for j in range(kw):
            cols.append(xp[:, i:i + (ho - 1) * stride + 1:stride,
                           j:j + (wo - 1) * stride + 1:stride, :])
    patches = jnp.concatenate(cols, axis=-1)           # [N, Ho, Wo, kh*kw*C]
    return patches.reshape(n * ho * wo, kh * kw * c), (n, ho, wo)


def conv_bn(x, p, *, kh, kw, stride=1, relu=True, residual=None):
    """x: NHWC bf16.  p['b']: pre-folded [kh*kw*Cin, Cout] bf16 weight matrix."""
    b = p["b"]
    cout = b.shape[1]
    if kh == 1 and kw == 1:
        if stride > 1:
            x = x[:, ::stride, ::stride, :]
        n, h, w, _ = x.shape
        a, shape_out = x.reshape(n * h * w, x.shape[-1]), (n, h, w)
    else:
        a, shape_out = _im2col(x, kh, kw, stride, (kh - 1) // 2)
    n, ho, wo = shape_out
    if residual is None:
        out = _matmul_affine(a, b, p["scale"], p["shift"], apply_relu=relu)
    else:
        res = residual.reshape(n * ho * wo, cout)
        out = _matmul_affine_res(a, b, p["scale"], p["shift"], res,
                                 apply_relu=relu)
    return out.reshape(n, ho, wo, cout)


def maxpool3x3_s2(x):
    n, h, w, c = x.shape
    xp = jnp.pad(x, ((0, 0), (1, 1), (1, 1), (0, 0)), constant_values=-jnp.inf)
    ho = (h + 2 - 3) // 2 + 1
    wo = (w + 2 - 3) // 2 + 1
    wins = []
    for i in range(3):
        for j in range(3):
            wins.append(xp[:, i:i + (ho - 1) * 2 + 1:2,
                           j:j + (wo - 1) * 2 + 1:2, :])
    windows = jnp.stack(wins, axis=0).reshape(9, n * ho * wo, c)
    return _maxpool_rows(windows).reshape(n, ho, wo, c)


# ----------------------------------------------------------------------------
# ResNet-152 parameters (He init, eval-mode BN folded to affine; weights are
# generated ONCE directly in the kernel's [K, Cout] bf16 layout - no per-call
# transpose or padding on the forward path).
# ----------------------------------------------------------------------------
def _bn_affine(cout, gamma):
    eps = 1e-5
    scale = jnp.full((1, cout), gamma / (1.0 + eps) ** 0.5, jnp.float32)
    shift = jnp.zeros((1, cout), jnp.float32)
    return scale, shift


def _conv_params(key, cin, cout, kh, kw, gamma=1.0):
    fan_in = cin * kh * kw
    std = (2.0 / fan_in) ** 0.5
    b = (jax.random.normal(key, (kh * kw * cin, cout), jnp.float32) * std)
    scale, shift = _bn_affine(cout, gamma)
    return {"b": b.astype(_ACT_DTYPE), "scale": scale, "shift": shift}


def _make_bottleneck(key, inplanes, planes, downsample):
    ks = jax.random.split(key, 4)
    p = {
        "conv1": _conv_params(ks[0], inplanes, planes, 1, 1),
        "conv2": _conv_params(ks[1], planes, planes, 3, 3),
        # small gamma on conv3 keeps the depth-152 residual chain bounded
        "conv3": _conv_params(ks[2], planes, planes * 4, 1, 1, gamma=0.2),
    }
    if downsample:
        p["downsample"] = _conv_params(ks[3], inplanes, planes * 4, 1, 1)
    return p


def init_resnet152_params(key):
    params = {}
    key, k = jax.random.split(key)
    params["conv1"] = _conv_params(k, 3, 64, 7, 7)
    inplanes = 64
    for li, (planes, blocks, _) in enumerate(_LAYER_CFG, start=1):
        blocks_p = []
        for b in range(blocks):
            key, k = jax.random.split(key)
            blocks_p.append(_make_bottleneck(k, inplanes, planes, downsample=(b == 0)))
            if b == 0:
                inplanes = planes * 4
        params[f"layer{li}"] = blocks_p
    return params


# ----------------------------------------------------------------------------
# Forward pass (== ImagePreprocesser.forward: returns the layer4 hook buffer)
# ----------------------------------------------------------------------------
@functools.partial(jax.jit, static_argnames=("stride",))
def _bottleneck_fwd(x, p, stride):
    out = conv_bn(x, p["conv1"], kh=1, kw=1, stride=1, relu=True)
    out = conv_bn(out, p["conv2"], kh=3, kw=3, stride=stride, relu=True)
    if "downsample" in p:
        identity = conv_bn(x, p["downsample"], kh=1, kw=1, stride=stride, relu=False)
    else:
        identity = x
    # conv3 + bn3 + residual add + relu fused in one Pallas kernel.
    return conv_bn(out, p["conv3"], kh=1, kw=1, stride=1, relu=True,
                   residual=identity)


@jax.jit
def _stem(x, p_conv1):
    x = conv_bn(x, p_conv1, kh=7, kw=7, stride=2, relu=True)
    return maxpool3x3_s2(x)


def image_preprocesser_forward(params, x_nchw):
    x = jnp.transpose(x_nchw, (0, 2, 3, 1)).astype(_ACT_DTYPE)   # NCHW -> NHWC bf16
    x = _stem(x, params["conv1"])
    for li, (_, _, stride) in enumerate(_LAYER_CFG, start=1):
        for bi, p in enumerate(params[f"layer{li}"]):
            x = _bottleneck_fwd(x, p, stride=(stride if bi == 0 else 1))
    # self.buffer == layer4 output; return in NCHW (f32) like the PyTorch hook.
    return jnp.transpose(x, (0, 3, 1, 2)).astype(jnp.float32)


if __name__ == "__main__":
    key = jax.random.PRNGKey(0)
    pkey, xkey = jax.random.split(key)
    params = init_resnet152_params(pkey)
    x = jax.random.normal(xkey, (2, 3, 64, 64), jnp.float32)     # NCHW like PyTorch
    out = image_preprocesser_forward(params, x)
    out = jax.block_until_ready(out)
    assert out.shape == (2, 2048, 2, 2), out.shape
    assert bool(jnp.all(jnp.isfinite(out)))
    print("KERNEL_OK")
</pallas_src>

<mosaic_0001>
module attributes {stable_mosaic.version = 11 : i64} {
  func.func @_mm_affine_kernel(%arg0: i32, %arg1: i32, %arg2: i32, %arg3: memref<256x147xbf16, #tpu.memory_space<vmem>>, %arg4: memref<147x64xbf16, #tpu.memory_space<vmem>>, %arg5: memref<1x64xf32, #tpu.memory_space<vmem>>, %arg6: memref<1x64xf32, #tpu.memory_space<vmem>>, %arg7: memref<256x64xbf16, #tpu.memory_space<vmem>>, %arg8: memref<256x64xf32, #tpu.memory_space<vmem>>) attributes {dimension_semantics = [#tpu.dimension_semantics<parallel>, #tpu.dimension_semantics<parallel>, #tpu.dimension_semantics<arbitrary>], iteration_bounds = array<i64: 8, 1, 1>, scalar_prefetch = 0 : i64, scratch_operands = 1 : i64, tpu.core_type = #tpu.core_type<tc>, window_params = [{transform_indices = @transform_0, window_bounds = array<i64: 256, 147>}, {transform_indices = @transform_1, window_bounds = array<i64: 147, 64>}, {transform_indices = @transform_2, window_bounds = array<i64: 1, 64>}, {transform_indices = @transform_3, window_bounds = array<i64: 1, 64>}, {transform_indices = @transform_4, window_bounds = array<i64: 256, 64>}]} {
    %c0_i32 = arith.constant 0 : i32
    %0 = arith.cmpi eq, %arg2, %c0_i32 : i32
    %1 = arith.extui %0 : i1 to i32
    %c0_i32_0 = arith.constant 0 : i32
    %2 = arith.cmpi ne, %1, %c0_i32_0 : i32
    scf.if %2 {
      %cst_10 = arith.constant 0.000000e+00 : f32
      %12 = vector.broadcast %cst_10 : f32 to vector<256x64xf32>
      %c0_11 = arith.constant 0 : index
      %c0_12 = arith.constant 0 : index
      %13 = vector.load %arg8[%c0_11, %c0_12] : memref<256x64xf32, #tpu.memory_space<vmem>>, vector<256x64xf32>
      tpu.vector_store %arg8[%c0_11, %c0_12], %12 {strides = array<i32>} : memref<256x64xf32, #tpu.memory_space<vmem>>, vector<256x64xf32>,
    } else {
    }
    %c0 = arith.constant 0 : index
    %c0_1 = arith.constant 0 : index
    %3 = vector.load %arg8[%c0, %c0_1] : memref<256x64xf32, #tpu.memory_space<vmem>>, vector<256x64xf32>
    %c0_2 = arith.constant 0 : index
    %c0_3 = arith.constant 0 : index
    %4 = vector.load %arg3[%c0_2, %c0_3] : memref<256x147xbf16, #tpu.memory_space<vmem>>, vector<256x147xbf16>
    %c0_4 = arith.constant 0 : index
    %c0_5 = arith.constant 0 : index
    %5 = vector.load %arg4[%c0_4, %c0_5] : memref<147x64xbf16, #tpu.memory_space<vmem>>, vector<147x64xbf16>
    %cst = arith.constant dense<0.000000e+00> : vector<256x64xf32>
    %6 = tpu.matmul %4, %5, %cst {dimension_numbers = #tpu.dot_dimension_numbers<[1], [0], [0], [1], [0, 0, 1, 1], [], []>} : vector<256x147xbf16>, vector<147x64xbf16>, vector<256x64xf32> -> vector<256x64xf32>
    %7 = arith.addf %3, %6 : vector<256x64xf32>
    %c0_6 = arith.constant 0 : index
    %c0_7 = arith.constant 0 : index
    %8 = vector.load %arg8[%c0_6, %c0_7] : memref<256x64xf32, #tpu.memory_space<vmem>>, vector<256x64xf32>
    tpu.vector_store %arg8[%c0_6, %c0_7], %7 {strides = array<i32>} : memref<256x64xf32, #tpu.memory_space<vmem>>, vector<256x64xf32>,
    %c0_i32_8 = arith.constant 0 : i32
    %9 = arith.cmpi eq, %arg2, %c0_i32_8 : i32
    %10 = arith.extui %9 : i1 to i32
    %c0_i32_9 = arith.constant 0 : i32
    %11 = arith.cmpi ne, %10, %c0_i32_9 : i32
    scf.if %11 {
      %c0_10 = arith.constant 0 : index
      %c0_11 = arith.constant 0 : index
      %12 = vector.load %arg8[%c0_10, %c0_11] : memref<256x64xf32, #tpu.memory_space<vmem>>, vector<256x64xf32>
      %c0_12 = arith.constant 0 : index
      %c0_13 = arith.constant 0 : index
      %13 = vector.load %arg5[%c0_12, %c0_13] : memref<1x64xf32, #tpu.memory_space<vmem>>, vector<1x64xf32>
      %14 = vector.broadcast %13 : vector<1x64xf32> to vector<256x64xf32>
      %15 = arith.mulf %12, %14 : vector<256x64xf32>
      %c0_14 = arith.constant 0 : index
      %c0_15 = arith.constant 0 : index
      %16 = vector.load %arg6[%c0_14, %c0_15] : memref<1x64xf32, #tpu.memory_space<vmem>>, vector<1x64xf32>
      %17 = vector.broadcast %16 : vector<1x64xf32> to vector<256x64xf32>
      %18 = arith.addf %15, %17 : vector<256x64xf32>
      %cst_16 = arith.constant 0.000000e+00 : f32
      %19 = vector.broadcast %cst_16 : f32 to vector<256x64xf32>
      %20 = arith.maximumf %18, %19 : vector<256x64xf32>
      %21 = arith.truncf %20 : vector<256x64xf32> to vector<256x64xbf16>
      %c0_17 = arith.constant 0 : index
      %c0_18 = arith.constant 0 : index
      %22 = vector.load %arg7[%c0_17, %c0_18] : memref<256x64xbf16, #tpu.memory_space<vmem>>, vector<256x64xbf16>
      tpu.vector_store %arg7[%c0_17, %c0_18], %21 {strides = array<i32>} : memref<256x64xbf16, #tpu.memory_space<vmem>>, vector<256x64xbf16>,
    } else {
    }
    return
  }
  func.func @transform_0(%arg0: i32, %arg1: i32, %arg2: i32) -> (i32, i32) {
    %c0_i32 = arith.constant 0 : i32
    return %arg0, %arg2 : i32, i32
  }
  func.func @transform_1(%arg0: i32, %arg1: i32, %arg2: i32) -> (i32, i32) {
    %c0_i32 = arith.constant 0 : i32
    return %arg2, %arg1 : i32, i32
  }
  func.func @transform_2(%arg0: i32, %arg1: i32, %arg2: i32) -> (i32, i32) {
    %c0_i32 = arith.constant 0 : i32
    %c0_i32_0 = arith.constant 0 : i32
    return %c0_i32, %arg1 : i32, i32
  }
  func.func @transform_3(%arg0: i32, %arg1: i32, %arg2: i32) -> (i32, i32) {
    %c0_i32 = arith.constant 0 : i32
    %c0_i32_0 = arith.constant 0 : i32
    return %c0_i32, %arg1 : i32, i32
  }
  func.func @transform_4(%arg0: i32, %arg1: i32, %arg2: i32) -> (i32, i32) {
    %c0_i32 = arith.constant 0 : i32
    return %arg0, %arg1 : i32, i32
  }
}

module attributes {stable_mosaic.version = 11 : i64} {
  func.func @_maxpool_kernel(%arg0: i32, %arg1: memref<9x256x128xbf16, #tpu.memory_space<vmem>>, %arg2: memref<256x128xbf16, #tpu.memory_space<vmem>>) attributes {dimension_semantics = [#tpu.dimension_semantics<parallel>], iteration_bounds = array<i64: 1>, scalar_prefetch = 0 : i64, scratch_operands = 0 : i64, tpu.core_type = #tpu.core_type<tc>, window_params = [{transform_indices = @transform_0, window_bounds = array<i64: 9, 256, 128>}, {transform_indices = @transform_1, window_bounds = array<i64: 256, 128>}]} {
    %c0 = arith.constant 0 : index
    %c0_0 = arith.constant 0 : index
    %c0_1 = arith.constant 0 : index
    %0 = vector.load %arg1[%c0, %c0_0, %c0_1] : memref<9x256x128xbf16, #tpu.memory_space<vmem>>, vector<9x256x128xbf16>
    %cst = arith.constant dense<0xFF80> : vector<256x128xbf16>
    %1 = vector.multi_reduction <maximumf>, %0, %cst [0] : vector<9x256x128xbf16> to vector<256x128xbf16>
    %c0_2 = arith.constant 0 : index
    %c0_3 = arith.constant 0 : index
    %2 = vector.load %arg2[%c0_2, %c0_3] : memref<256x128xbf16, #tpu.memory_space<vmem>>, vector<256x128xbf16>
    tpu.vector_store %arg2[%c0_2, %c0_3], %1 {strides = array<i32>} : memref<256x128xbf16, #tpu.memory_space<vmem>>, vector<256x128xbf16>,
    return
  }
  func.func @transform_0(%arg0: i32) -> (i32, i32, i32) {
    %c0_i32 = arith.constant 0 : i32
    %c0_i32_0 = arith.constant 0 : i32
    %c0_i32_1 = arith.constant 0 : i32
    return %c0_i32, %arg0, %c0_i32_0 : i32, i32, i32
  }
  func.func @transform_1(%arg0: i32) -> (i32, i32) {
    %c0_i32 = arith.constant 0 : i32
    %c0_i32_0 = arith.constant 0 : i32
    return %arg0, %c0_i32 : i32, i32
  }
}

</mosaic_0001>

<llo_original>
// kernel: _stem.2
$region0: #{_stem.2}
  #allocation0 [shape = 'u32[]', space=smem, size = 0x4, offset = 0x4, fixed_abs, tag = 'smem constant byte address 0x4 - core index']
  #allocation1 [shape = 'u32[144,128]{1,0:T(1,128)}', space=vmem, size = 0x12000, scoped, tag = 'internal scratch']
  #allocation2 [shape = 'f32[256,64]{1,0:T(8,128)}', space=vmem, size = 0x20000, scoped, tag = 'scratch operand']
  %s0 = inlined_call_operand.vmem [shape: bf16[2048,147], index: 0, kind: input, shape index: {}]
  %s1 = inlined_call_operand.vmem [shape: bf16[147,64], index: 1, kind: input, shape index: {}]
  %s2 = inlined_call_operand.vmem [shape: f32[1,64], index: 2, kind: input, shape index: {}]
  %s3 = inlined_call_operand.vmem [shape: f32[1,64], index: 3, kind: input, shape index: {}]
  %s4 = inlined_call_operand.vmem [shape: bf16[2048,64], index: 4, kind: output, shape index: {}]
  %s5 = sld [smem:[#allocation0]]
  $region57: #{_stem.2} parent=0
    _
  %s7 = ssub.s32 1, %s5
  %s8 = scalar_select 0, %s7, %s5
  loop: start=0, step=1, limit=10
  $region2: #{_stem.2} parent=0 // loop_pre_header
    _
  $region3: #{_stem.2} parent=0 // loop_header
    %s10 = sphi 0, %s14
    %p11 = scmp.ge.s32.totalorder %s10, 10
    %s17 = sphi 0, %s36
    %s18 = sphi 0, %s32
    %s19 = sphi 0, %s28
    %s20 = sphi 0, %s17
    %s21 = sphi 0, %s18
    %s22 = sphi 0, %s19
    %s23 = sphi 0, %s20
    %s24 = sphi 0, %s21
    %s25 = sphi 0, %s22
    %s41 = sphi 0, %s43
    %s44 = sphi 0, %s41
    %s45 = sphi 0, %s44
    %s61 = sphi 0, %s45
    %s69 = sphi 0, %s71
    %s72 = sphi 0, %s69
    %s73 = sphi 0, %s72
    %s89 = sphi 0, %s73
    %s95 = sphi 0, %s97
    %s98 = sphi 0, %s95
    %s99 = sphi 0, %s98
    %s115 = sphi 0, %s99
    %s121 = sphi 0, %s123
    %s124 = sphi 0, %s121
    %s125 = sphi 0, %s124
    %s141 = sphi 0, %s125
    %s149 = sphi 0, %s151
    %s152 = sphi 0, %s149
    %s153 = sphi 0, %s152
    %s169 = sphi 0, %s153
  $region4: #{_stem.2} parent=0 // loop_header_branch
    %13 = sbr.rel (%p11) target = $region8
  $region5: #{_stem.2} parent=0 // loop_body
    %s15 = ssub.s32 %s10, 1
    %s16 = ssub.s32 %s10, 2
    %s26 = sadd.s32 1, %s19
    %p27 = scmp.ge.s32.totalorder %s26, 1
    %s28 = scalar_select %p27, 0, %s26
    %s29 = sadd.s32 1, %s18
    %s30 = scalar_select %p27, %s29, %s18
    %p31 = scmp.ge.s32.totalorder %s30, 1
    %s32 = scalar_select %p31, 0, %s30
    %s33 = sadd.s32 1, %s17
    %s34 = scalar_select %p31, %s33, %s17
    %p35 = scmp.ge.s32.totalorder %s34, 8
    %s36 = scalar_select %p35, 0, %s34
    %s37 = ssub.s32 %s17, %s36
    %s38 = ssub.s32 %s19, %s28
    %s39 = sor.u32 %s37, %s38
    %p40 = scmp.eq.s32.totalorder %s39, 0
    %s42 = sadd.s32 %s41, 1
    %s43 = scalar_select %p40, %s41, %s42
    %p46 = pneg %p40
    %p47 = scmp.eq.s32.totalorder %s10, 7
    %p48 = por %p46, %p47
    %p49 = scmp.ne.s32.totalorder %s41, %s44
    %p50 = scmp.eq.s32.totalorder %s10, 0
    %p51 = por %p49, %p50
    %p52 = scmp.ne.s32.totalorder %s41, %s44
    %p53 = scmp.eq.s32.totalorder %s15, 7
    %p54 = por %p52, %p53
    %p55 = scmp.ne.s32.totalorder %s44, %s45
    %p56 = scmp.eq.s32.totalorder %s15, 0
    %p57 = por %p55, %p56
    %p58 = scmp.ne.s32.totalorder %s44, %s45
    %p59 = scmp.eq.s32.totalorder %s16, 7
    %p60 = por %p58, %p59
    %p62 = scmp.ne.s32.totalorder %s45, %s61
    %p63 = scmp.eq.s32.totalorder %s16, 0
    %p64 = por %p62, %p63
    %s65 = ssub.s32 %s19, %s28
    %s66 = ssub.s32 %s18, %s32
    %s67 = sor.u32 %s65, %s66
    %p68 = scmp.eq.s32.totalorder %s67, 0
    %s70 = sadd.s32 %s69, 1
    %s71 = scalar_select %p68, %s69, %s70
    %p74 = pneg %p68
    %p75 = scmp.eq.s32.totalorder %s10, 7
    %p76 = por %p74, %p75
    %p77 = scmp.ne.s32.totalorder %s69, %s72
    %p78 = scmp.eq.s32.totalorder %s10, 0
    %p79 = por %p77, %p78
    %p80 = scmp.ne.s32.totalorder %s69, %s72
    %p81 = scmp.eq.s32.totalorder %s15, 7
    %p82 = por %p80, %p81
    %p83 = scmp.ne.s32.totalorder %s72, %s73
    %p84 = scmp.eq.s32.totalorder %s15, 0
    %p85 = por %p83, %p84
    %p86 = scmp.ne.s32.totalorder %s72, %s73
    %p87 = scmp.eq.s32.totalorder %s16, 7
    %p88 = por %p86, %p87
    %p90 = scmp.ne.s32.totalorder %s73, %s89
    %p91 = scmp.eq.s32.totalorder %s16, 0
    %p92 = por %p90, %p91
    %s93 = ssub.s32 %s18, %s32
    %p94 = scmp.eq.s32.totalorder %s93, 0
    %s96 = sadd.s32 %s95, 1
    %s97 = scalar_select %p94, %s95, %s96
    %p100 = pneg %p94
    %p101 = scmp.eq.s32.totalorder %s10, 7
    %p102 = por %p100, %p101
    %p103 = scmp.ne.s32.totalorder %s95, %s98
    %p104 = scmp.eq.s32.totalorder %s10, 0
    %p105 = por %p103, %p104
    %p106 = scmp.ne.s32.totalorder %s95, %s98
    %p107 = scmp.eq.s32.totalorder %s15, 7
    %p108 = por %p106, %p107
    %p109 = scmp.ne.s32.totalorder %s98, %s99
    %p110 = scmp.eq.s32.totalorder %s15, 0
    %p111 = por %p109, %p110
    %p112 = scmp.ne.s32.totalorder %s98, %s99
    %p113 = scmp.eq.s32.totalorder %s16, 7
    %p114 = por %p112, %p113
    %p116 = scmp.ne.s32.totalorder %s99, %s115
    %p117 = scmp.eq.s32.totalorder %s16, 0
    %p118 = por %p116, %p117
    %s119 = ssub.s32 %s18, %s32
    %p120 = scmp.eq.s32.totalorder %s119, 0
    %s122 = sadd.s32 %s121, 1
    %s123 = scalar_select %p120, %s121, %s122
    %p126 = pneg %p120
    %p127 = scmp.eq.s32.totalorder %s10, 7
    %p128 = por %p126, %p127
    %p129 = scmp.ne.s32.totalorder %s121, %s124
    %p130 = scmp.eq.s32.totalorder %s10, 0
    %p131 = por %p129, %p130
    %p132 = scmp.ne.s32.totalorder %s121, %s124
    %p133 = scmp.eq.s32.totalorder %s15, 7
    %p134 = por %p132, %p133
    %p135 = scmp.ne.s32.totalorder %s124, %s125
    %p136 = scmp.eq.s32.totalorder %s15, 0
    %p137 = por %p135, %p136
    %p138 = scmp.ne.s32.totalorder %s124, %s125
    %p139 = scmp.eq.s32.totalorder %s16, 7
    %p140 = por %p138, %p139
    %p142 = scmp.ne.s32.totalorder %s125, %s141
    %p143 = scmp.eq.s32.totalorder %s16, 0
    %p144 = por %p142, %p143
    %s145 = ssub.s32 %s17, %s36
    %s146 = ssub.s32 %s18, %s32
    %s147 = sor.u32 %s145, %s146
    %p148 = scmp.eq.s32.totalorder %s147, 0
    %s150 = sadd.s32 %s149, 1
    %s151 = scalar_select %p148, %s149, %s150
    %p154 = pneg %p148
    %p155 = scmp.eq.s32.totalorder %s10, 7
    %p156 = por %p154, %p155
    %p157 = scmp.ne.s32.totalorder %s149, %s152
    %p158 = scmp.eq.s32.totalorder %s10, 0
    %p159 = por %p157, %p158
    %p160 = scmp.ne.s32.totalorder %s149, %s152
    %p161 = scmp.eq.s32.totalorder %s15, 7
    %p162 = por %p160, %p161
    %p163 = scmp.ne.s32.totalorder %s152, %s153
    %p164 = scmp.eq.s32.totalorder %s15, 0
    %p165 = por %p163, %p164
    %p166 = scmp.ne.s32.totalorder %s152, %s153
    %p167 = scmp.eq.s32.totalorder %s16, 7
    %p168 = por %p166, %p167
    %p170 = scmp.ne.s32.totalorder %s153, %s169
    %p171 = scmp.eq.s32.totalorder %s16, 0
    %p172 = por %p170, %p171
    %p173 = scmp.le.s32.totalorder 1, %s10
    %p174 = scmp.lt.s32.totalorder %s10, 9
    %p175 = pnand %p173, %p174
    %p176 = pneg %p175
    // Predicated region
    $region9: #{_stem.2} parent=5 // pred_check
      _
    $region10: #{_stem.2} parent=5 // pred_check_branch
      %178 = sbr.rel (%p175) target = $region12
    $region11: #{_stem.2} parent=5 // pred_region
      %s179 = ssub.s32 %s10, 1
      // Predicated region
      $region13: #{_stem.2} parent=11 // pred_check
        %p180 = pneg %p85
      $region14: #{_stem.2} parent=11 // pred_check_branch
        %182 = sbr.rel (%p180) target = $region16
      $region15: #{_stem.2} parent=11 // pred_region
        %s183 = smul.u32 19, %s22
        %p184 = scmp.lt.s32.totalorder %s183, 18
        %s185 = scalar_select %p184, %s183, 18
        %p186 = scmp.lt.s32.totalorder %s21, 0
        %s187 = scalar_select %p186, %s21, 0
        %s188 = sadd.s32 %s187, %s185
        %s189 = smul.addr %s188, 4
        %s190 = scalar_lea.vmem %s1, %s189
        %s191 = smul.u32 19, %s22
      $region16: #{_stem.2} parent=11 // pred_fallthru
        _
      // Predicated region
      $region17: #{_stem.2} parent=11 // pred_check
        %p192 = pneg %p111
      $region18: #{_stem.2} parent=11 // pred_check_branch
        %194 = sbr.rel (%p192) target = $region20
      $region19: #{_stem.2} parent=11 // pred_region
        %p195 = scmp.lt.s32.totalorder %s21, 0
        %s196 = scalar_select %p195, %s21, 0
        %s197 = scalar_lea.vmem %s2, %s196
      $region20: #{_stem.2} parent=11 // pred_fallthru
        _
      // Predicated region
      $region21: #{_stem.2} parent=11 // pred_check
        %p198 = pneg %p137
      $region22: #{_stem.2} parent=11 // pred_check_branch
        %200 = sbr.rel (%p198) target = $region24
      $region23: #{_stem.2} parent=11 // pred_region
        %p201 = scmp.lt.s32.totalorder %s21, 0
        %s202 = scalar_select %p201, %s21, 0
        %s203 = scalar_lea.vmem %s3, %s202
      $region24: #{_stem.2} parent=11 // pred_fallthru
        _
    $region12: #{_stem.2} parent=5 // pred_fallthru
      _
    %p204 = scmp.lt.s32.totalorder %s10, 8
    // Predicated region
    $region25: #{_stem.2} parent=5 // pred_check
      %p205 = pneg %p204
    $region26: #{_stem.2} parent=5 // pred_check_branch
      %207 = sbr.rel (%p205) target = $region28
    $region27: #{_stem.2} parent=5 // pred_region
      // Predicated region
      $region29: #{_stem.2} parent=27 // pred_check
        %p208 = pneg %p51
      $region30: #{_stem.2} parent=27 // pred_check_branch
        %210 = sbr.rel (%p208) target = $region32
      $region31: #{_stem.2} parent=27 // pred_region
        %s211 = smul.u32 32, %s17
        %s212 = smul.u32 2, %s19
        %p213 = scmp.lt.s32.totalorder %s211, 255
        %s214 = scalar_select %p213, %s211, 255
        %p215 = scmp.lt.s32.totalorder %s212, 1
        %s216 = scalar_select %p215, %s212, 1
        %s217 = smul.addr %s214, 2
        %s218 = sadd.s32 %s216, %s217
        %s219 = smul.addr %s218, 4
        %s220 = scalar_lea.vmem %s0, %s219
        %s221 = smul.u32 32, %s17
        %s222 = smul.u32 2, %s19
      $region32: #{_stem.2} parent=27 // pred_fallthru
        _
    $region28: #{_stem.2} parent=5 // pred_fallthru
      _
    %p223 = scmp.le.s32.totalorder 1, %s10
    %p224 = scmp.lt.s32.totalorder %s10, 9
    %p225 = pnand %p223, %p224
    %p226 = pneg %p225
    // Predicated region
    $region33: #{_stem.2} parent=5 // pred_check
      _
    $region34: #{_stem.2} parent=5 // pred_check_branch
      %228 = sbr.rel (%p225) target = $region36
    $region35: #{_stem.2} parent=5 // pred_region
      %s229 = ssub.s32 %s10, 1
      %s230 = smul.u32 32, %s20
      %s231 = smul.u32 2, %s22
      %p232 = scmp.lt.s32.totalorder %s230, 255
      %s233 = scalar_select %p232, %s230, 255
      %p234 = scmp.lt.s32.totalorder %s231, 1
      %s235 = scalar_select %p234, %s231, 1
      %s236 = smul.addr %s233, 2
      %s237 = sadd.s32 %s235, %s236
      %s238 = smul.addr %s237, 4
      %s239 = scalar_lea.vmem %s0, %s238
      %p240 = pneg %p57
      %p241 = pneg %p54
      %s242 = smul.u32 19, %s22
      %p243 = scmp.lt.s32.totalorder %s242, 18
      %s244 = scalar_select %p243, %s242, 18
      %p245 = scmp.lt.s32.totalorder %s21, 0
      %s246 = scalar_select %p245, %s21, 0
      %s247 = sadd.s32 %s246, %s244
      %s248 = smul.addr %s247, 4
      %s249 = scalar_lea.vmem %s1, %s248
      %p250 = pneg %p85
      %p251 = pneg %p82
      %p252 = scmp.lt.s32.totalorder %s21, 0
      %s253 = scalar_select %p252, %s21, 0
      %s254 = scalar_lea.vmem %s2, %s253
      %p255 = pneg %p111
      %p256 = pneg %p108
      %p257 = scmp.lt.s32.totalorder %s21, 0
      %s258 = scalar_select %p257, %s21, 0
      %s259 = scalar_lea.vmem %s3, %s258
      %p260 = pneg %p137
      %p261 = pneg %p134
      %p262 = pneg %p165
      %p263 = pneg %p162
      %s264 = smul.u32 32, %s20
      %p265 = scmp.lt.s32.totalorder %s264, 255
      %s266 = scalar_select %p265, %s264, 255
      %p267 = scmp.lt.s32.totalorder %s21, 0
      %s268 = scalar_select %p267, %s21, 0
      %s269 = sadd.s32 %s268, %s266
      %s270 = smul.addr %s269, 4
      %s271 = scalar_lea.vmem %s4, %s270
      %s272 = smul.u32 32, %s20
      %s273 = smul.u32 2, %s22
      %p274 = scmp.lt.s32.totalorder %s272, 255
      %s275 = scalar_select %p274, %s272, 255
      %p276 = scmp.lt.s32.totalorder %s273, 1
      %s277 = scalar_select %p276, %s273, 1
      %s278 = smul.addr %s275, 2
      %s279 = sadd.s32 %s277, %s278
      %s280 = smul.addr %s279, 4
      %s281 = scalar_lea.vmem %s0, %s280
      %s282 = smul.u32 32, %s20
      %s283 = smul.u32 2, %s22
      %s284 = smul.u32 19, %s22
      %p285 = scmp.lt.s32.totalorder %s284, 18
      %s286 = scalar_select %p285, %s284, 18
      %p287 = scmp.lt.s32.totalorder %s21, 0
      %s288 = scalar_select %p287, %s21, 0
      %s289 = sadd.s32 %s288, %s286
      %s290 = smul.addr %s289, 4
      %s291 = scalar_lea.vmem %s1, %s290
      %s292 = smul.u32 19, %s22
      %p293 = scmp.lt.s32.totalorder %s21, 0
      %s294 = scalar_select %p293, %s21, 0
      %s295 = scalar_lea.vmem %s2, %s294
      %p296 = scmp.lt.s32.totalorder %s21, 0
      %s297 = scalar_select %p296, %s21, 0
      %s298 = scalar_lea.vmem %s3, %s297
      %s299 = smul.u32 32, %s20
      %p300 = scmp.lt.s32.totalorder %s299, 255
      %s301 = scalar_select %p300, %s299, 255
      %p302 = scmp.lt.s32.totalorder %s21, 0
      %s303 = scalar_select %p302, %s21, 0
      %s304 = sadd.s32 %s303, %s301
      %s305 = smul.addr %s304, 4
      %s306 = scalar_lea.vmem %s4, %s305
      %s307 = smul.u32 32, %s20
      %p309 = scmp.eq.s32.totalorder %s22, 0
      // Predicated region
      $region37: #{_stem.2} parent=35 // pred_check
        %p310 = pneg %p309
      $region38: #{_stem.2} parent=35 // pred_check_branch
        %312 = sbr.rel (%p310) target = $region40
      $region39: #{_stem.2} parent=35 // pred_region
        %vm313 = vcmask 523264
        %314 = vst.msk [vmem:[#allocation2] sm:$0xff] %vm313, 0.0
        %315 = vst.msk [vmem:[#allocation2 + $0x8] sm:$0xff] %vm313, 0.0
        %316 = vst.msk [vmem:[#allocation2 + $0x10] sm:$0xff] %vm313, 0.0
        %317 = vst.msk [vmem:[#allocation2 + $0x18] sm:$0xff] %vm313, 0.0
        %318 = vst.msk [vmem:[#allocation2 + $0x20] sm:$0xff] %vm313, 0.0
        %319 = vst.msk [vmem:[#allocation2 + $0x28] sm:$0xff] %vm313, 0.0
        %320 = vst.msk [vmem:[#allocation2 + $0x30] sm:$0xff] %vm313, 0.0
        %321 = vst.msk [vmem:[#allocation2 + $0x38] sm:$0xff] %vm313, 0.0
        %322 = vst.msk [vmem:[#allocation2 + $0x40] sm:$0xff] %vm313, 0.0
        %323 = vst.msk [vmem:[#allocation2 + $0x48] sm:$0xff] %vm313, 0.0
        %324 = vst.msk [vmem:[#allocation2 + $0x50] sm:$0xff] %vm313, 0.0
        %325 = vst.msk [vmem:[#allocation2 + $0x58] sm:$0xff] %vm313, 0.0
        %326 = vst.msk [vmem:[#allocation2 + $0x60] sm:$0xff] %vm313, 0.0
        %327 = vst.msk [vmem:[#allocation2 + $0x68] sm:$0xff] %vm313, 0.0
        %328 = vst.msk [vmem:[#allocation2 + $0x70] sm:$0xff] %vm313, 0.0
        %329 = vst.msk [vmem:[#allocation2 + $0x78] sm:$0xff] %vm313, 0.0
        %330 = vst.msk [vmem:[#allocation2 + $0x80] sm:$0xff] %vm313, 0.0
        %331 = vst.msk [vmem:[#allocation2 + $0x88] sm:$0xff] %vm313, 0.0
        %332 = vst.msk [vmem:[#allocation2 + $0x90] sm:$0xff] %vm313, 0.0
        %333 = vst.msk [vmem:[#allocation2 + $0x98] sm:$0xff] %vm313, 0.0
        %334 = vst.msk [vmem:[#allocation2 + $0xa0] sm:$0xff] %vm313, 0.0
        %335 = vst.msk [vmem:[#allocation2 + $0xa8] sm:$0xff] %vm313, 0.0
        %336 = vst.msk [vmem:[#allocation2 + $0xb0] sm:$0xff] %vm313, 0.0
        %337 = vst.msk [vmem:[#allocation2 + $0xb8] sm:$0xff] %vm313, 0.0
        %338 = vst.msk [vmem:[#allocation2 + $0xc0] sm:$0xff] %vm313, 0.0
        %339 = vst.msk [vmem:[#allocation2 + $0xc8] sm:$0xff] %vm313, 0.0
        %340 = vst.msk [vmem:[#allocation2 + $0xd0] sm:$0xff] %vm313, 0.0
        %341 = vst.msk [vmem:[#allocation2 + $0xd8] sm:$0xff] %vm313, 0.0
        %342 = vst.msk [vmem:[#allocation2 + $0xe0] sm:$0xff] %vm313, 0.0
        %343 = vst.msk [vmem:[#allocation2 + $0xe8] sm:$0xff] %vm313, 0.0
        %344 = vst.msk [vmem:[#allocation2 + $0xf0] sm:$0xff] %vm313, 0.0
        %345 = vst.msk [vmem:[#allocation2 + $0xf8] sm:$0xff] %vm313, 0.0
      $region40: #{_stem.2} parent=35 // pred_fallthru
        _
      %v346 = vld [vmem:[#allocation2] sm:$0xff]
      %v347 = vld [vmem:[#allocation2 + $0x8] sm:$0xff]
      %v348 = vld [vmem:[#allocation2 + $0x10] sm:$0xff]
      %v349 = vld [vmem:[#allocation2 + $0x18] sm:$0xff]
      %v350 = vld [vmem:[#allocation2 + $0x20] sm:$0xff]
      %v351 = vld [vmem:[#allocation2 + $0x28] sm:$0xff]
      %v352 = vld [vmem:[#allocation2 + $0x30] sm:$0xff]
      %v353 = vld [vmem:[#allocation2 + $0x38] sm:$0xff]
      %v354 = vld [vmem:[#allocation2 + $0x40] sm:$0xff]
      %v355 = vld [vmem:[#allocation2 + $0x48] sm:$0xff]
      %v356 = vld [vmem:[#allocation2 + $0x50] sm:$0xff]
      %v357 = vld [vmem:[#allocation2 + $0x58] sm:$0xff]
      %v358 = vld [vmem:[#allocation2 + $0x60] sm:$0xff]
      %v359 = vld [vmem:[#allocation2 + $0x68] sm:$0xff]
      %v360 = vld [vmem:[#allocation2 + $0x70] sm:$0xff]
      %v361 = vld [vmem:[#allocation2 + $0x78] sm:$0xff]
      %v362 = vld [vmem:[#allocation2 + $0x80] sm:$0xff]
      %v363 = vld [vmem:[#allocation2 + $0x88] sm:$0xff]
      %v364 = vld [vmem:[#allocation2 + $0x90] sm:$0xff]
      %v365 = vld [vmem:[#allocation2 + $0x98] sm:$0xff]
      %v366 = vld [vmem:[#allocation2 + $0xa0] sm:$0xff]
      %v367 = vld [vmem:[#allocation2 + $0xa8] sm:$0xff]
      %v368 = vld [vmem:[#allocation2 + $0xb0] sm:$0xff]
      %v369 = vld [vmem:[#allocation2 + $0xb8] sm:$0xff]
      %v370 = vld [vmem:[#allocation2 + $0xc0] sm:$0xff]
      %v371 = vld [vmem:[#allocation2 + $0xc8] sm:$0xff]
      %v372 = vld [vmem:[#allocation2 + $0xd0] sm:$0xff]
      %v373 = vld [vmem:[#allocation2 + $0xd8] sm:$0xff]
      %v374 = vld [vmem:[#allocation2 + $0xe0] sm:$0xff]
      %v375 = vld [vmem:[#allocation2 + $0xe8] sm:$0xff]
      %v376 = vld [vmem:[#allocation2 + $0xf0] sm:$0xff]
      %v377 = vld [vmem:[#allocation2 + $0xf8] sm:$0xff]
      %v378 = vld [vmem:[%s281] sm:$0xff]
      %v379 = vld [vmem:[%s281 + $0x8] sm:$0xff]
      %v380 = vld [vmem:[%s281 + $0x10] sm:$0xff]
      %v381 = vld [vmem:[%s281 + $0x18] sm:$0xff]
      %v382 = vld [vmem:[%s281 + $0x20] sm:$0xff]
      %v383 = vld [vmem:[%s281 + $0x28] sm:$0xff]
      %v384 = vld [vmem:[%s281 + $0x30] sm:$0xff]
      %v385 = vld [vmem:[%s281 + $0x38] sm:$0xff]
      %v386 = vld [vmem:[%s281 + $0x40] sm:$0xff]
      %v387 = vld [vmem:[%s281 + $0x48] sm:$0xff]
      %v388 = vld [vmem:[%s281 + $0x50] sm:$0xff]
      %v389 = vld [vmem:[%s281 + $0x58] sm:$0xff]
      %v390 = vld [vmem:[%s281 + $0x60] sm:$0xff]
      %v391 = vld [vmem:[%s281 + $0x68] sm:$0xff]
      %v392 = vld [vmem:[%s281 + $0x70] sm:$0xff]
      %v393 = vld [vmem:[%s281 + $0x78] sm:$0xff]
      %v394 = vld [vmem:[%s281 + $0x80] sm:$0xff]
      %v395 = vld [vmem:[%s281 + $0x88] sm:$0xff]
      %v396 = vld [vmem:[%s281 + $0x90] sm:$0xff]
      %v397 = vld [vmem:[%s281 + $0x98] sm:$0xff]
      %v398 = vld [vmem:[%s281 + $0xa0] sm:$0xff]
      %v399 = vld [vmem:[%s281 + $0xa8] sm:$0xff]
      %v400 = vld [vmem:[%s281 + $0xb0] sm:$0xff]
      %v401 = vld [vmem:[%s281 + $0xb8] sm:$0xff]
      %v402 = vld [vmem:[%s281 + $0xc0] sm:$0xff]
      %v403 = vld [vmem:[%s281 + $0xc8] sm:$0xff]
      %v404 = vld [vmem:[%s281 + $0xd0] sm:$0xff]
      %v405 = vld [vmem:[%s281 + $0xd8] sm:$0xff]
      %v406 = vld [vmem:[%s281 + $0xe0] sm:$0xff]
      %v407 = vld [vmem:[%s281 + $0xe8] sm:$0xff]
      %v408 = vld [vmem:[%s281 + $0xf0] sm:$0xff]
      %v409 = vld [vmem:[%s281 + $0xf8] sm:$0xff]
      %v410 = vld [vmem:[%s291] sm:$0xf]
      %v411 = vld [vmem:[%s291 + $0x4] sm:$0xf]
      %v412 = vld [vmem:[%s291 + $0x8] sm:$0xf]
      %v413 = vld [vmem:[%s291 + $0xc] sm:$0xf]
      %v414 = vld [vmem:[%s291 + $0x10] sm:$0xf]
      %v415 = vld [vmem:[%s291 + $0x14] sm:$0xf]
      %v416 = vld [vmem:[%s291 + $0x18] sm:$0xf]
      %v417 = vld [vmem:[%s291 + $0x1c] sm:$0xf]
      %v418 = vld [vmem:[%s291 + $0x20] sm:$0xf]
      %v419 = vld [vmem:[%s291 + $0x24] sm:$0xf]
      %v420 = vld [vmem:[%s291 + $0x28] sm:$0xf]
      %v421 = vld [vmem:[%s291 + $0x2c] sm:$0xf]
      %v422 = vld [vmem:[%s291 + $0x30] sm:$0xf]
      %v423 = vld [vmem:[%s291 + $0x34] sm:$0xf]
      %v424 = vld [vmem:[%s291 + $0x38] sm:$0xf]
      %v425 = vld [vmem:[%s291 + $0x3c] sm:$0xf]
      %v426 = vld [vmem:[%s291 + $0x40] sm:$0xf]
      %v427 = vld [vmem:[%s291 + $0x44] sm:$0xf]
      %v428 = vld [vmem:[%s291 + $0x48] sm:$0x3]
      %v461 = vunpack.c.l.b16 %v378
      %v462 = vunpack.c.h.b16 %v378
      %v463 = vunpack.c.l.b16 %v379
      %v464 = vunpack.c.h.b16 %v379
      %v465 = vunpack.c.l.b16 %v380
      %v466 = vunpack.c.h.b16 %v380
      %v467 = vunpack.c.l.b16 %v381
      %v468 = vunpack.c.h.b16 %v381
      %v469 = vunpack.c.l.b16 %v382
      %v470 = vunpack.c.h.b16 %v382
      %v471 = vunpack.c.l.b16 %v383
      %v472 = vunpack.c.h.b16 %v383
      %v473 = vunpack.c.l.b16 %v384
      %v474 = vunpack.c.h.b16 %v384
      %v475 = vunpack.c.l.b16 %v385
      %v476 = vunpack.c.h.b16 %v385
      %v477 = vunpack.c.l.b16 %v386
      %v478 = vunpack.c.h.b16 %v386
      %v479 = vunpack.c.l.b16 %v387
      %v480 = vunpack.c.h.b16 %v387
      %v481 = vunpack.c.l.b16 %v388
      %v482 = vunpack.c.h.b16 %v388
      %v483 = vunpack.c.l.b16 %v389
      %v484 = vunpack.c.h.b16 %v389
      %v485 = vunpack.c.l.b16 %v390
      %v486 = vunpack.c.h.b16 %v390
      %v487 = vunpack.c.l.b16 %v391
      %v488 = vunpack.c.h.b16 %v391
      %v489 = vunpack.c.l.b16 %v392
      %v490 = vunpack.c.h.b16 %v392
      %v491 = vunpack.c.l.b16 %v393
      %v492 = vunpack.c.h.b16 %v393
      %v493 = vunpack.c.l.b16 %v394
      %v494 = vunpack.c.h.b16 %v394
      %v495 = vunpack.c.l.b16 %v395
      %v496 = vunpack.c.h.b16 %v395
      %v497 = vunpack.c.l.b16 %v396
      %v498 = vunpack.c.h.b16 %v396
      %v499 = vunpack.c.l.b16 %v397
      %v500 = vunpack.c.h.b16 %v397
      %v501 = vunpack.c.l.b16 %v398
      %v502 = vunpack.c.h.b16 %v398
      %v503 = vunpack.c.l.b16 %v399
      %v504 = vunpack.c.h.b16 %v399
      %v505 = vunpack.c.l.b16 %v400
      %v506 = vunpack.c.h.b16 %v400
      %v507 = vunpack.c.l.b16 %v401
      %v508 = vunpack.c.h.b16 %v401
      %v509 = vunpack.c.l.b16 %v402
      %v510 = vunpack.c.h.b16 %v402
      %v511 = vunpack.c.l.b16 %v403
      %v512 = vunpack.c.h.b16 %v403
      %v513 = vunpack.c.l.b16 %v404
      %v514 = vunpack.c.h.b16 %v404
      %v515 = vunpack.c.l.b16 %v405
      %v516 = vunpack.c.h.b16 %v405
      %v517 = vunpack.c.l.b16 %v406
      %v518 = vunpack.c.h.b16 %v406
      %v519 = vunpack.c.l.b16 %v407
      %v520 = vunpack.c.h.b16 %v407
      %v521 = vunpack.c.l.b16 %v408
      %v522 = vunpack.c.h.b16 %v408
      %v523 = vunpack.c.l.b16 %v409
      %v524 = vunpack.c.h.b16 %v409
      %v525 = vpack.c.b16 %v463, %v461
      %v526 = vpack.c.b16 %v464, %v462
      %v527 = vpack.c.b16 %v467, %v465
      %v528 = vpack.c.b16 %v468, %v466
      %v529 = vpack.c.b16 %v471, %v469
      %v530 = vpack.c.b16 %v472, %v470
      %v531 = vpack.c.b16 %v475, %v473
      %v532 = vpack.c.b16 %v476, %v474
      %v533 = vpack.c.b16 %v479, %v477
      %v534 = vpack.c.b16 %v480, %v478
      %v535 = vpack.c.b16 %v483, %v481
      %v536 = vpack.c.b16 %v484, %v482
      %v537 = vpack.c.b16 %v487, %v485
      %v538 = vpack.c.b16 %v488, %v486
      %v539 = vpack.c.b16 %v491, %v489
      %v540 = vpack.c.b16 %v492, %v490
      %v541 = vpack.c.b16 %v495, %v493
      %v542 = vpack.c.b16 %v496, %v494
      %v543 = vpack.c.b16 %v499, %v497
      %v544 = vpack.c.b16 %v500, %v498
      %v545 = vpack.c.b16 %v503, %v501
      %v546 = vpack.c.b16 %v504, %v502
      %v547 = vpack.c.b16 %v507, %v505
      %v548 = vpack.c.b16 %v508, %v506
      %v549 = vpack.c.b16 %v511, %v509
      %v550 = vpack.c.b16 %v512, %v510
      %v551 = vpack.c.b16 %v515, %v513
      %v552 = vpack.c.b16 %v516, %v514
      %v553 = vpack.c.b16 %v519, %v517
      %v554 = vpack.c.b16 %v520, %v518
      %v555 = vpack.c.b16 %v523, %v521
      %v556 = vpack.c.b16 %v524, %v522
      %v592 = vunpack.c.l.b16 %v410
      %v593 = vunpack.c.l.b16 %v411
      %v594 = vunpack.c.l.b16 %v412
      %v595 = vunpack.c.l.b16 %v413
      %v596 = vunpack.c.l.b16 %v414
      %v597 = vunpack.c.l.b16 %v415
      %v598 = vunpack.c.l.b16 %v416
      %v599 = vunpack.c.l.b16 %v417
      %v600 = vunpack.c.l.b16 %v418
      %v601 = vunpack.c.l.b16 %v419
      %v602 = vunpack.c.l.b16 %v420
      %v603 = vunpack.c.l.b16 %v421
      %v604 = vunpack.c.l.b16 %v422
      %v605 = vunpack.c.l.b16 %v423
      %v606 = vunpack.c.l.b16 %v424
      %v607 = vunpack.c.l.b16 %v425
      %v608 = vunpack.c.l.b16 %v426
      %v609 = vunpack.c.l.b16 %v427
      %v610 = vunpack.c.l.b16 %v428
      %v611 = vpack.c.b16 %v593, %v592
      %v612 = vpack.c.b16 %v595, %v594
      %v613 = vpack.c.b16 %v597, %v596
      %v614 = vpack.c.b16 %v599, %v598
      %v615 = vpack.c.b16 %v601, %v600
      %v616 = vpack.c.b16 %v603, %v602
      %v617 = vpack.c.b16 %v605, %v604
      %v618 = vpack.c.b16 %v607, %v606
      %v619 = vpack.c.b16 %v609, %v608
      %v620 = vpack.c.b16 %v610, %v610
      %vm630 = vcmask 154624
      %v632 = vsel %vm630, %v526, 0
      %v635 = vsel %vm630, %v528, 0
      %v638 = vsel %vm630, %v530, 0
      %v641 = vsel %vm630, %v532, 0
      %v644 = vsel %vm630, %v534, 0
      %v647 = vsel %vm630, %v536, 0
      %v650 = vsel %vm630, %v538, 0
      %v653 = vsel %vm630, %v540, 0
      %v656 = vsel %vm630, %v542, 0
      %v659 = vsel %vm630, %v544, 0
      %v662 = vsel %vm630, %v546, 0
      %v665 = vsel %vm630, %v548, 0
      %v668 = vsel %vm630, %v550, 0
      %v671 = vsel %vm630, %v552, 0
      %v674 = vsel %vm630, %v554, 0
      %v677 = vsel %vm630, %v556, 0
      %vm679 = vcmask 1040384
      %vm680 = vcmask 1041408
      %v681 = vsel %vm679, 4294967295, 65535
      %v682 = vsel %vm680, %v681, 0
      %v684 = vand.u32 %v620, %v682
      %686 = vmatprep.subr.bf16.mxu0 0
      %687 = vmatpush1.bf16.msra.mxu0 %v618
      %688 = vmatprep.subr.bf16.mxu0 0
      %689 = vmatpush1.bf16.msra.mxu0 %v617
      %690 = vmatprep.subr.bf16.mxu0 0
      %691 = vmatpush1.bf16.msra.mxu0 %v616
      %692 = vmatprep.subr.bf16.mxu0 0
      %693 = vmatpush1.bf16.msra.mxu0 %v615
      %694 = vmatprep.subr.bf16.mxu0 0
      %695 = vmatpush1.bf16.msra.mxu0 %v614
      %696 = vmatprep.subr.bf16.mxu0 0
      %697 = vmatpush1.bf16.msra.mxu0 %v613
      %698 = vmatprep.subr.bf16.mxu0 0
      %699 = vmatpush1.bf16.msra.mxu0 %v612
      %700 = vmatprep.subr.bf16.mxu0 0
      %701 = vmatpush1.bf16.msra.mxu0 %v611
      %702 = vmatprep.subr.bf16.mxu0 0
      %703 = vmatpush2.bf16.msra.mxu0 0
      %704 = vmatprep.subr.bf16.mxu0 0
      %705 = vmatpush2.bf16.msra.mxu0 0
      %706 = vmatprep.subr.bf16.mxu0 0
      %707 = vmatpush2.bf16.msra.mxu0 0
      %708 = vmatprep.subr.bf16.mxu0 0
      %709 = vmatpush2.bf16.msra.mxu0 0
      %710 = vmatprep.subr.bf16.mxu0 0
      %711 = vmatpush2.bf16.msra.mxu0 0
      %712 = vmatprep.subr.bf16.mxu0 0
      %713 = vmatpush2.bf16.msra.mxu0 0
      %714 = vmatprep.subr.bf16.mxu0 0
      %715 = vmatpush2.bf16.msra.mxu0 %v684
      %716 = vmatprep.subr.bf16.mxu0 0
      %717 = vmatpush2.bf16.msra.mxu0 %v619
      %718 = vmatprep.mubr.bf16.mxu0 %v632
      %719 = vmatmul.mubr.bf16.gmra.mxu0 %v525
      %v720 = vpop.f32.mrf.mxu0
      %v721 = vadd.f32 0.0, %v720
      %v722 = vpop.f32.mrf.mxu0
      %v723 = vpop.f32.mrf.mxu0
      %v724 = vadd.f32 0.0, %v723
      %v725 = vpop.f32.mrf.mxu0
      %726 = vmatprep.mubr.bf16.mxu0 %v635
      %727 = vmatmul.mubr.bf16.gmra.mxu0 %v527
      %v728 = vpop.f32.mrf.mxu0
      %v729 = vadd.f32 0.0, %v728
      %v730 = vpop.f32.mrf.mxu0
      %v731 = vpop.f32.mrf.mxu0
      %v732 = vadd.f32 0.0, %v731
      %v733 = vpop.f32.mrf.mxu0
      %734 = vmatprep.mubr.bf16.mxu0 %v638
      %735 = vmatmul.mubr.bf16.gmra.mxu0 %v529
      %v736 = vpop.f32.mrf.mxu0
      %v737 = vadd.f32 0.0, %v736
      %v738 = vpop.f32.mrf.mxu0
      %v739 = vpop.f32.mrf.mxu0
      %v740 = vadd.f32 0.0, %v739
      %v741 = vpop.f32.mrf.mxu0
      %742 = vmatprep.mubr.bf16.mxu0 %v641
      %743 = vmatmul.mubr.bf16.gmra.mxu0 %v531
      %v744 = vpop.f32.mrf.mxu0
      %v745 = vadd.f32 0.0, %v744
      %v746 = vpop.f32.mrf.mxu0
      %v747 = vpop.f32.mrf.mxu0
      %v748 = vadd.f32 0.0, %v747
      %v749 = vpop.f32.mrf.mxu0
      %750 = vmatprep.mubr.bf16.mxu0 %v644
      %751 = vmatmul.mubr.bf16.gmra.mxu0 %v533
      %v752 = vpop.f32.mrf.mxu0
      %v753 = vadd.f32 0.0, %v752
      %v754 = vpop.f32.mrf.mxu0
      %v755 = vpop.f32.mrf.mxu0
      %v756 = vadd.f32 0.0, %v755
      %v757 = vpop.f32.mrf.mxu0
      %758 = vmatprep.mubr.bf16.mxu0 %v647
      %759 = vmatmul.mubr.bf16.gmra.mxu0 %v535
      %v760 = vpop.f32.mrf.mxu0
      %v761 = vadd.f32 0.0, %v760
      %v762 = vpop.f32.mrf.mxu0
      %v763 = vpop.f32.mrf.mxu0
      %v764 = vadd.f32 0.0, %v763
      %v765 = vpop.f32.mrf.mxu0
      %766 = vmatprep.mubr.bf16.mxu0 %v650
      %767 = vmatmul.mubr.bf16.gmra.mxu0 %v537
      %v768 = vpop.f32.mrf.mxu0
      %v769 = vadd.f32 0.0, %v768
      %v770 = vpop.f32.mrf.mxu0
      %v771 = vpop.f32.mrf.mxu0
      %v772 = vadd.f32 0.0, %v771
      %v773 = vpop.f32.mrf.mxu0
      %774 = vmatprep.mubr.bf16.mxu0 %v653
      %775 = vmatmul.mubr.bf16.gmra.mxu0 %v539
      %v776 = vpop.f32.mrf.mxu0
      %v777 = vadd.f32 0.0, %v776
      %v778 = vpop.f32.mrf.mxu0
      %v779 = vpop.f32.mrf.mxu0
      %v780 = vadd.f32 0.0, %v779
      %v781 = vpop.f32.mrf.mxu0
      %782 = vmatprep.mubr.bf16.mxu0 %v656
      %783 = vmatmul.mubr.bf16.gmra.mxu0 %v541
      %v784 = vpop.f32.mrf.mxu0
      %v785 = vadd.f32 0.0, %v784
      %v786 = vpop.f32.mrf.mxu0
      %v787 = vpop.f32.mrf.mxu0
      %v788 = vadd.f32 0.0, %v787
      %v789 = vpop.f32.mrf.mxu0
      %790 = vmatprep.mubr.bf16.mxu0 %v659
      %791 = vmatmul.mubr.bf16.gmra.mxu0 %v543
      %v792 = vpop.f32.mrf.mxu0
      %v793 = vadd.f32 0.0, %v792
      %v794 = vpop.f32.mrf.mxu0
      %v795 = vpop.f32.mrf.mxu0
      %v796 = vadd.f32 0.0, %v795
      %v797 = vpop.f32.mrf.mxu0
      %798 = vmatprep.mubr.bf16.mxu0 %v662
      %799 = vmatmul.mubr.bf16.gmra.mxu0 %v545
      %v800 = vpop.f32.mrf.mxu0
      %v801 = vadd.f32 0.0, %v800
      %v802 = vpop.f32.mrf.mxu0
      %v803 = vpop.f32.mrf.mxu0
      %v804 = vadd.f32 0.0, %v803
      %v805 = vpop.f32.mrf.mxu0
      %806 = vmatprep.mubr.bf16.mxu0 %v665
      %807 = vmatmul.mubr.bf16.gmra.mxu0 %v547
      %v808 = vpop.f32.mrf.mxu0
      %v809 = vadd.f32 0.0, %v808
      %v810 = vpop.f32.mrf.mxu0
      %v811 = vpop.f32.mrf.mxu0
      %v812 = vadd.f32 0.0, %v811
      %v813 = vpop.f32.mrf.mxu0
      %814 = vmatprep.mubr.bf16.mxu0 %v668
      %815 = vmatmul.mubr.bf16.gmra.mxu0 %v549
      %v816 = vpop.f32.mrf.mxu0
      %v817 = vadd.f32 0.0, %v816
      %v818 = vpop.f32.mrf.mxu0
      %v819 = vpop.f32.mrf.mxu0
      %v820 = vadd.f32 0.0, %v819
      %v821 = vpop.f32.mrf.mxu0
      %822 = vmatprep.mubr.bf16.mxu0 %v671
      %823 = vmatmul.mubr.bf16.gmra.mxu0 %v551
      %v824 = vpop.f32.mrf.mxu0
      %v825 = vadd.f32 0.0, %v824
      %v826 = vpop.f32.mrf.mxu0
      %v827 = vpop.f32.mrf.mxu0
      %v828 = vadd.f32 0.0, %v827
      %v829 = vpop.f32.mrf.mxu0
      %830 = vmatprep.mubr.bf16.mxu0 %v674
      %831 = vmatmul.mubr.bf16.gmra.mxu0 %v553
      %v832 = vpop.f32.mrf.mxu0
      %v833 = vadd.f32 0.0, %v832
      %v834 = vpop.f32.mrf.mxu0
      %v835 = vpop.f32.mrf.mxu0
      %v836 = vadd.f32 0.0, %v835
      %v837 = vpop.f32.mrf.mxu0
      %838 = vmatprep.mubr.bf16.mxu0 %v677
      %839 = vmatmul.mubr.bf16.gmra.mxu0 %v555
      %v840 = vpop.f32.mrf.mxu0
      %v841 = vadd.f32 0.0, %v840
      %v842 = vpop.f32.mrf.mxu0
      %v843 = vpop.f32.mrf.mxu0
      %v844 = vadd.f32 0.0, %v843
      %v845 = vpop.f32.mrf.mxu0
      %846 = vdwg.mxu0
      %v847 = vadd.f32 %v346, %v721
      %v848 = vadd.f32 %v347, %v724
      %v849 = vadd.f32 %v348, %v729
      %v850 = vadd.f32 %v349, %v732
      %v851 = vadd.f32 %v350, %v737
      %v852 = vadd.f32 %v351, %v740
      %v853 = vadd.f32 %v352, %v745
      %v854 = vadd.f32 %v353, %v748
      %v855 = vadd.f32 %v354, %v753
      %v856 = vadd.f32 %v355, %v756
      %v857 = vadd.f32 %v356, %v761
      %v858 = vadd.f32 %v357, %v764
      %v859 = vadd.f32 %v358, %v769
      %v860 = vadd.f32 %v359, %v772
      %v861 = vadd.f32 %v360, %v777
      %v862 = vadd.f32 %v361, %v780
      %v863 = vadd.f32 %v362, %v785
      %v864 = vadd.f32 %v363, %v788
      %v865 = vadd.f32 %v364, %v793
      %v866 = vadd.f32 %v365, %v796
      %v867 = vadd.f32 %v366, %v801
      %v868 = vadd.f32 %v367, %v804
      %v869 = vadd.f32 %v368, %v809
      %v870 = vadd.f32 %v369, %v812
      %v871 = vadd.f32 %v370, %v817
      %v872 = vadd.f32 %v371, %v820
      %v873 = vadd.f32 %v372, %v825
      %v874 = vadd.f32 %v373, %v828
      %v875 = vadd.f32 %v374, %v833
      %v876 = vadd.f32 %v375, %v836
      %v877 = vadd.f32 %v376, %v841
      %v878 = vadd.f32 %v377, %v844
      %vm879 = vcmask 523264
      %880 = vst.msk [vmem:[#allocation2] sm:$0xff] %vm879, %v847
      %881 = vst.msk [vmem:[#allocation2 + $0x8] sm:$0xff] %vm879, %v848
      %882 = vst.msk [vmem:[#allocation2 + $0x10] sm:$0xff] %vm879, %v849
      %883 = vst.msk [vmem:[#allocation2 + $0x18] sm:$0xff] %vm879, %v850
      %884 = vst.msk [vmem:[#allocation2 + $0x20] sm:$0xff] %vm879, %v851
      %885 = vst.msk [vmem:[#allocation2 + $0x28] sm:$0xff] %vm879, %v852
      %886 = vst.msk [vmem:[#allocation2 + $0x30] sm:$0xff] %vm879, %v853
      %887 = vst.msk [vmem:[#allocation2 + $0x38] sm:$0xff] %vm879, %v854
      %888 = vst.msk [vmem:[#allocation2 + $0x40] sm:$0xff] %vm879, %v855
      %889 = vst.msk [vmem:[#allocation2 + $0x48] sm:$0xff] %vm879, %v856
      %890 = vst.msk [vmem:[#allocation2 + $0x50] sm:$0xff] %vm879, %v857
      %891 = vst.msk [vmem:[#allocation2 + $0x58] sm:$0xff] %vm879, %v858
      %892 = vst.msk [vmem:[#allocation2 + $0x60] sm:$0xff] %vm879, %v859
      %893 = vst.msk [vmem:[#allocation2 + $0x68] sm:$0xff] %vm879, %v860
      %894 = vst.msk [vmem:[#allocation2 + $0x70] sm:$0xff] %vm879, %v861
      %895 = vst.msk [vmem:[#allocation2 + $0x78] sm:$0xff] %vm879, %v862
      %896 = vst.msk [vmem:[#allocation2 + $0x80] sm:$0xff] %vm879, %v863
      %897 = vst.msk [vmem:[#allocation2 + $0x88] sm:$0xff] %vm879, %v864
      %898 = vst.msk [vmem:[#allocation2 + $0x90] sm:$0xff] %vm879, %v865
      %899 = vst.msk [vmem:[#allocation2 + $0x98] sm:$0xff] %vm879, %v866
      %900 = vst.msk [vmem:[#allocation2 + $0xa0] sm:$0xff] %vm879, %v867
      %901 = vst.msk [vmem:[#allocation2 + $0xa8] sm:$0xff] %vm879, %v868
      %902 = vst.msk [vmem:[#allocation2 + $0xb0] sm:$0xff] %vm879, %v869
      %903 = vst.msk [vmem:[#allocation2 + $0xb8] sm:$0xff] %vm879, %v870
      %904 = vst.msk [vmem:[#allocation2 + $0xc0] sm:$0xff] %vm879, %v871
      %905 = vst.msk [vmem:[#allocation2 + $0xc8] sm:$0xff] %vm879, %v872
      %906 = vst.msk [vmem:[#allocation2 + $0xd0] sm:$0xff] %vm879, %v873
      %907 = vst.msk [vmem:[#allocation2 + $0xd8] sm:$0xff] %vm879, %v874
      %908 = vst.msk [vmem:[#allocation2 + $0xe0] sm:$0xff] %vm879, %v875
      %909 = vst.msk [vmem:[#allocation2 + $0xe8] sm:$0xff] %vm879, %v876
      %910 = vst.msk [vmem:[#allocation2 + $0xf0] sm:$0xff] %vm879, %v877
      %911 = vst.msk [vmem:[#allocation2 + $0xf8] sm:$0xff] %vm879, %v878
      // Predicated region
      $region41: #{_stem.2} parent=35 // pred_check
        %p912 = pneg %p309
      $region42: #{_stem.2} parent=35 // pred_check_branch
        %914 = sbr.rel (%p912) target = $region44
      $region43: #{_stem.2} parent=35 // pred_region
        %v915 = vld [vmem:[#allocation2] sm:$0xff]
        %v916 = vld [vmem:[#allocation2 + $0x8] sm:$0xff]
        %v917 = vld [vmem:[#allocation2 + $0x10] sm:$0xff]
        %v918 = vld [vmem:[#allocation2 + $0x18] sm:$0xff]
        %v919 = vld [vmem:[#allocation2 + $0x20] sm:$0xff]
        %v920 = vld [vmem:[#allocation2 + $0x28] sm:$0xff]
        %v921 = vld [vmem:[#allocation2 + $0x30] sm:$0xff]
        %v922 = vld [vmem:[#allocation2 + $0x38] sm:$0xff]
        %v923 = vld [vmem:[#allocation2 + $0x40] sm:$0xff]
        %v924 = vld [vmem:[#allocation2 + $0x48] sm:$0xff]
        %v925 = vld [vmem:[#allocation2 + $0x50] sm:$0xff]
        %v926 = vld [vmem:[#allocation2 + $0x58] sm:$0xff]
        %v927 = vld [vmem:[#allocation2 + $0x60] sm:$0xff]
        %v928 = vld [vmem:[#allocation2 + $0x68] sm:$0xff]
        %v929 = vld [vmem:[#allocation2 + $0x70] sm:$0xff]
        %v930 = vld [vmem:[#allocation2 + $0x78] sm:$0xff]
        %v931 = vld [vmem:[#allocation2 + $0x80] sm:$0xff]
        %v932 = vld [vmem:[#allocation2 + $0x88] sm:$0xff]
        %v933 = vld [vmem:[#allocation2 + $0x90] sm:$0xff]
        %v934 = vld [vmem:[#allocation2 + $0x98] sm:$0xff]
        %v935 = vld [vmem:[#allocation2 + $0xa0] sm:$0xff]
        %v936 = vld [vmem:[#allocation2 + $0xa8] sm:$0xff]
        %v937 = vld [vmem:[#allocation2 + $0xb0] sm:$0xff]
        %v938 = vld [vmem:[#allocation2 + $0xb8] sm:$0xff]
        %v939 = vld [vmem:[#allocation2 + $0xc0] sm:$0xff]
        %v940 = vld [vmem:[#allocation2 + $0xc8] sm:$0xff]
        %v941 = vld [vmem:[#allocation2 + $0xd0] sm:$0xff]
        %v942 = vld [vmem:[#allocation2 + $0xd8] sm:$0xff]
        %v943 = vld [vmem:[#allocation2 + $0xe0] sm:$0xff]
        %v944 = vld [vmem:[#allocation2 + $0xe8] sm:$0xff]
        %v945 = vld [vmem:[#allocation2 + $0xf0] sm:$0xff]
        %v946 = vld [vmem:[#allocation2 + $0xf8] sm:$0xff]
        %v947 = vld [vmem:[%s295] sm:$0x1]
        %v949 = vlaneseq
        %v950 = vshrl.u32 %v949, 7
        %v951 = vsub.s32 0, %v950
        %v952 = vrot.slane %v947, %v951
        %v954 = vmul.f32 %v915, %v952
        %v955 = vmul.f32 %v916, %v952
        %v956 = vmul.f32 %v917, %v952
        %v957 = vmul.f32 %v918, %v952
        %v958 = vmul.f32 %v919, %v952
        %v959 = vmul.f32 %v920, %v952
        %v960 = vmul.f32 %v921, %v952
        %v961 = vmul.f32 %v922, %v952
        %v962 = vmul.f32 %v923, %v952
        %v963 = vmul.f32 %v924, %v952
        %v964 = vmul.f32 %v925, %v952
        %v965 = vmul.f32 %v926, %v952
        %v966 = vmul.f32 %v927, %v952
        %v967 = vmul.f32 %v928, %v952
        %v968 = vmul.f32 %v929, %v952
        %v969 = vmul.f32 %v930, %v952
        %v970 = vmul.f32 %v931, %v952
        %v971 = vmul.f32 %v932, %v952
        %v972 = vmul.f32 %v933, %v952
        %v973 = vmul.f32 %v934, %v952
        %v974 = vmul.f32 %v935, %v952
        %v975 = vmul.f32 %v936, %v952
        %v976 = vmul.f32 %v937, %v952
        %v977 = vmul.f32 %v938, %v952
        %v978 = vmul.f32 %v939, %v952
        %v979 = vmul.f32 %v940, %v952
        %v980 = vmul.f32 %v941, %v952
        %v981 = vmul.f32 %v942, %v952
        %v982 = vmul.f32 %v943, %v952
        %v983 = vmul.f32 %v944, %v952
        %v984 = vmul.f32 %v945, %v952
        %v985 = vmul.f32 %v946, %v952
        %v986 = vld [vmem:[%s298] sm:$0x1]
        %v988 = vlaneseq
        %v989 = vshrl.u32 %v988, 7
        %v990 = vsub.s32 0, %v989
        %v991 = vrot.slane %v986, %v990
        %v993 = vadd.f32 %v954, %v991
        %v994 = vadd.f32 %v955, %v991
        %v995 = vadd.f32 %v956, %v991
        %v996 = vadd.f32 %v957, %v991
        %v997 = vadd.f32 %v958, %v991
        %v998 = vadd.f32 %v959, %v991
        %v999 = vadd.f32 %v960, %v991
        %v1000 = vadd.f32 %v961, %v991
        %v1001 = vadd.f32 %v962, %v991
        %v1002 = vadd.f32 %v963, %v991
        %v1003 = vadd.f32 %v964, %v991
        %v1004 = vadd.f32 %v965, %v991
        %v1005 = vadd.f32 %v966, %v991
        %v1006 = vadd.f32 %v967, %v991
        %v1007 = vadd.f32 %v968, %v991
        %v1008 = vadd.f32 %v969, %v991
        %v1009 = vadd.f32 %v970, %v991
        %v1010 = vadd.f32 %v971, %v991
        %v1011 = vadd.f32 %v972, %v991
        %v1012 = vadd.f32 %v973, %v991
        %v1013 = vadd.f32 %v974, %v991
        %v1014 = vadd.f32 %v975, %v991
        %v1015 = vadd.f32 %v976, %v991
        %v1016 = vadd.f32 %v977, %v991
        %v1017 = vadd.f32 %v978, %v991
        %v1018 = vadd.f32 %v979, %v991
        %v1019 = vadd.f32 %v980, %v991
        %v1020 = vadd.f32 %v981, %v991
        %v1021 = vadd.f32 %v982, %v991
        %v1022 = vadd.f32 %v983, %v991
        %v1023 = vadd.f32 %v984, %v991
        %v1024 = vadd.f32 %v985, %v991
        %v1025 = vmax.f32 %v993, 0.0
        %v1026 = vmax.f32 %v994, 0.0
        %v1027 = vmax.f32 %v995, 0.0
        %v1028 = vmax.f32 %v996, 0.0
        %v1029 = vmax.f32 %v997, 0.0
        %v1030 = vmax.f32 %v998, 0.0
        %v1031 = vmax.f32 %v999, 0.0
        %v1032 = vmax.f32 %v1000, 0.0
        %v1033 = vmax.f32 %v1001, 0.0
        %v1034 = vmax.f32 %v1002, 0.0
        %v1035 = vmax.f32 %v1003, 0.0
        %v1036 = vmax.f32 %v1004, 0.0
        %v1037 = vmax.f32 %v1005, 0.0
        %v1038 = vmax.f32 %v1006, 0.0
        %v1039 = vmax.f32 %v1007, 0.0
        %v1040 = vmax.f32 %v1008, 0.0
        %v1041 = vmax.f32 %v1009, 0.0
        %v1042 = vmax.f32 %v1010, 0.0
        %v1043 = vmax.f32 %v1011, 0.0
        %v1044 = vmax.f32 %v1012, 0.0
        %v1045 = vmax.f32 %v1013, 0.0
        %v1046 = vmax.f32 %v1014, 0.0
        %v1047 = vmax.f32 %v1015, 0.0
        %v1048 = vmax.f32 %v1016, 0.0
        %v1049 = vmax.f32 %v1017, 0.0
        %v1050 = vmax.f32 %v1018, 0.0
        %v1051 = vmax.f32 %v1019, 0.0
        %v1052 = vmax.f32 %v1020, 0.0
        %v1053 = vmax.f32 %v1021, 0.0
        %v1054 = vmax.f32 %v1022, 0.0
        %v1055 = vmax.f32 %v1023, 0.0
        %v1056 = vmax.f32 %v1024, 0.0
        %v1057 = vpack.c.bf16 %v1026, %v1025
        %v1058 = vpack.c.bf16 %v1028, %v1027
        %v1059 = vpack.c.bf16 %v1030, %v1029
        %v1060 = vpack.c.bf16 %v1032, %v1031
        %v1061 = vpack.c.bf16 %v1034, %v1033
        %v1062 = vpack.c.bf16 %v1036, %v1035
        %v1063 = vpack.c.bf16 %v1038, %v1037
        %v1064 = vpack.c.bf16 %v1040, %v1039
        %v1065 = vpack.c.bf16 %v1042, %v1041
        %v1066 = vpack.c.bf16 %v1044, %v1043
        %v1067 = vpack.c.bf16 %v1046, %v1045
        %v1068 = vpack.c.bf16 %v1048, %v1047
        %v1069 = vpack.c.bf16 %v1050, %v1049
        %v1070 = vpack.c.bf16 %v1052, %v1051
        %v1071 = vpack.c.bf16 %v1054, %v1053
        %v1072 = vpack.c.bf16 %v1056, %v1055
        %v1089 = vunpack.c.l.b16 %v1057
        %v1090 = vunpack.c.h.b16 %v1057
        %v1091 = vunpack.c.l.b16 %v1058
        %v1092 = vunpack.c.h.b16 %v1058
        %v1093 = vunpack.c.l.b16 %v1059
        %v1094 = vunpack.c.h.b16 %v1059
        %v1095 = vunpack.c.l.b16 %v1060
        %v1096 = vunpack.c.h.b16 %v1060
        %v1097 = vunpack.c.l.b16 %v1061
        %v1098 = vunpack.c.h.b16 %v1061
        %v1099 = vunpack.c.l.b16 %v1062
        %v1100 = vunpack.c.h.b16 %v1062
        %v1101 = vunpack.c.l.b16 %v1063
        %v1102 = vunpack.c.h.b16 %v1063
        %v1103 = vunpack.c.l.b16 %v1064
        %v1104 = vunpack.c.h.b16 %v1064
        %v1105 = vunpack.c.l.b16 %v1065
        %v1106 = vunpack.c.h.b16 %v1065
        %v1107 = vunpack.c.l.b16 %v1066
        %v1108 = vunpack.c.h.b16 %v1066
        %v1109 = vunpack.c.l.b16 %v1067
        %v1110 = vunpack.c.h.b16 %v1067
        %v1111 = vunpack.c.l.b16 %v1068
        %v1112 = vunpack.c.h.b16 %v1068
        %v1113 = vunpack.c.l.b16 %v1069
        %v1114 = vunpack.c.h.b16 %v1069
        %v1115 = vunpack.c.l.b16 %v1070
        %v1116 = vunpack.c.h.b16 %v1070
        %v1117 = vunpack.c.l.b16 %v1071
        %v1118 = vunpack.c.h.b16 %v1071
        %v1119 = vunpack.c.l.b16 %v1072
        %v1120 = vunpack.c.h.b16 %v1072
        %v1121 = vpack.c.b16 %v1089, %v1089
        %v1122 = vpack.c.b16 %v1090, %v1090
        %v1123 = vpack.c.b16 %v1091, %v1091
        %v1124 = vpack.c.b16 %v1092, %v1092
        %v1125 = vpack.c.b16 %v1093, %v1093
        %v1126 = vpack.c.b16 %v1094, %v1094
        %v1127 = vpack.c.b16 %v1095, %v1095
        %v1128 = vpack.c.b16 %v1096, %v1096
        %v1129 = vpack.c.b16 %v1097, %v1097
        %v1130 = vpack.c.b16 %v1098, %v1098
        %v1131 = vpack.c.b16 %v1099, %v1099
        %v1132 = vpack.c.b16 %v1100, %v1100
        %v1133 = vpack.c.b16 %v1101, %v1101
        %v1134 = vpack.c.b16 %v1102, %v1102
        %v1135 = vpack.c.b16 %v1103, %v1103
        %v1136 = vpack.c.b16 %v1104, %v1104
        %v1137 = vpack.c.b16 %v1105, %v1105
        %v1138 = vpack.c.b16 %v1106, %v1106
        %v1139 = vpack.c.b16 %v1107, %v1107
        %v1140 = vpack.c.b16 %v1108, %v1108
        %v1141 = vpack.c.b16 %v1109, %v1109
        %v1142 = vpack.c.b16 %v1110, %v1110
        %v1143 = vpack.c.b16 %v1111, %v1111
        %v1144 = vpack.c.b16 %v1112, %v1112
        %v1145 = vpack.c.b16 %v1113, %v1113
        %v1146 = vpack.c.b16 %v1114, %v1114
        %v1147 = vpack.c.b16 %v1115, %v1115
        %v1148 = vpack.c.b16 %v1116, %v1116
        %v1149 = vpack.c.b16 %v1117, %v1117
        %v1150 = vpack.c.b16 %v1118, %v1118
        %v1151 = vpack.c.b16 %v1119, %v1119
        %v1152 = vpack.c.b16 %v1120, %v1120
        %vm1185 = vcmask 519168
        %1186 = vst.msk [vmem:[%s306] sm:$0xf] %vm1185, %v1121
        %1187 = vst.msk [vmem:[%s306 + $0x4] sm:$0xf] %vm1185, %v1122
        %1188 = vst.msk [vmem:[%s306 + $0x8] sm:$0xf] %vm1185, %v1123
        %1189 = vst.msk [vmem:[%s306 + $0xc] sm:$0xf] %vm1185, %v1124
        %1190 = vst.msk [vmem:[%s306 + $0x10] sm:$0xf] %vm1185, %v1125
        %1191 = vst.msk [vmem:[%s306 + $0x14] sm:$0xf] %vm1185, %v1126
        %1192 = vst.msk [vmem:[%s306 + $0x18] sm:$0xf] %vm1185, %v1127
        %1193 = vst.msk [vmem:[%s306 + $0x1c] sm:$0xf] %vm1185, %v1128
        %1194 = vst.msk [vmem:[%s306 + $0x20] sm:$0xf] %vm1185, %v1129
        %1195 = vst.msk [vmem:[%s306 + $0x24] sm:$0xf] %vm1185, %v1130
        %1196 = vst.msk [vmem:[%s306 + $0x28] sm:$0xf] %vm1185, %v1131
        %1197 = vst.msk [vmem:[%s306 + $0x2c] sm:$0xf] %vm1185, %v1132
        %1198 = vst.msk [vmem:[%s306 + $0x30] sm:$0xf] %vm1185, %v1133
        %1199 = vst.msk [vmem:[%s306 + $0x34] sm:$0xf] %vm1185, %v1134
        %1200 = vst.msk [vmem:[%s306 + $0x38] sm:$0xf] %vm1185, %v1135
        %1201 = vst.msk [vmem:[%s306 + $0x3c] sm:$0xf] %vm1185, %v1136
        %1202 = vst.msk [vmem:[%s306 + $0x40] sm:$0xf] %vm1185, %v1137
        %1203 = vst.msk [vmem:[%s306 + $0x44] sm:$0xf] %vm1185, %v1138
        %1204 = vst.msk [vmem:[%s306 + $0x48] sm:$0xf] %vm1185, %v1139
        %1205 = vst.msk [vmem:[%s306 + $0x4c] sm:$0xf] %vm1185, %v1140
        %1206 = vst.msk [vmem:[%s306 + $0x50] sm:$0xf] %vm1185, %v1141
        %1207 = vst.msk [vmem:[%s306 + $0x54] sm:$0xf] %vm1185, %v1142
        %1208 = vst.msk [vmem:[%s306 + $0x58] sm:$0xf] %vm1185, %v1143
        %1209 = vst.msk [vmem:[%s306 + $0x5c] sm:$0xf] %vm1185, %v1144
        %1210 = vst.msk [vmem:[%s306 + $0x60] sm:$0xf] %vm1185, %v1145
        %1211 = vst.msk [vmem:[%s306 + $0x64] sm:$0xf] %vm1185, %v1146
        %1212 = vst.msk [vmem:[%s306 + $0x68] sm:$0xf] %vm1185, %v1147
        %1213 = vst.msk [vmem:[%s306 + $0x6c] sm:$0xf] %vm1185, %v1148
        %1214 = vst.msk [vmem:[%s306 + $0x70] sm:$0xf] %vm1185, %v1149
        %1215 = vst.msk [vmem:[%s306 + $0x74] sm:$0xf] %vm1185, %v1150
        %1216 = vst.msk [vmem:[%s306 + $0x78] sm:$0xf] %vm1185, %v1151
        %1217 = vst.msk [vmem:[%s306 + $0x7c] sm:$0xf] %vm1185, %v1152
      $region44: #{_stem.2} parent=35 // pred_fallthru
        _
      %s1218 = smul.u32 32, %s20
      %p1219 = scmp.lt.s32.totalorder %s1218, 255
      %s1220 = scalar_select %p1219, %s1218, 255
      %p1221 = scmp.lt.s32.totalorder %s21, 0
      %s1222 = scalar_select %p1221, %s21, 0
      %s1223 = sadd.s32 %s1222, %s1220
      %s1224 = smul.addr %s1223, 4
      %s1225 = scalar_lea.vmem %s4, %s1224
      // Predicated region
      $region45: #{_stem.2} parent=35 // pred_check
        %p1226 = pneg %p162
      $region46: #{_stem.2} parent=35 // pred_check_branch
        %1228 = sbr.rel (%p1226) target = $region48
      $region47: #{_stem.2} parent=35 // pred_region
        %s1229 = smul.u32 32, %s20
      $region48: #{_stem.2} parent=35 // pred_fallthru
        _
    $region36: #{_stem.2} parent=5 // pred_fallthru
      _
    %p1230 = scmp.le.s32.totalorder 2, %s10
    // Predicated region
    $region49: #{_stem.2} parent=5 // pred_check
      %p1231 = pneg %p1230
    $region50: #{_stem.2} parent=5 // pred_check_branch
      %1233 = sbr.rel (%p1231) target = $region52
    $region51: #{_stem.2} parent=5 // pred_region
      %s1234 = ssub.s32 %s10, 2
      // Predicated region
      $region53: #{_stem.2} parent=51 // pred_check
        %p1235 = pneg %p168
      $region54: #{_stem.2} parent=51 // pred_check_branch
        %1237 = sbr.rel (%p1235) target = $region56
      $region55: #{_stem.2} parent=51 // pred_region
        %s1238 = smul.u32 32, %s23
        %p1239 = scmp.lt.s32.totalorder %s1238, 255
        %s1240 = scalar_select %p1239, %s1238, 255
        %p1241 = scmp.lt.s32.totalorder %s24, 0
        %s1242 = scalar_select %p1241, %s24, 0
        %s1243 = sadd.s32 %s1242, %s1240
        %s1244 = smul.addr %s1243, 4
        %s1245 = scalar_lea.vmem %s4, %s1244
      $region56: #{_stem.2} parent=51 // pred_fallthru
        _
    $region52: #{_stem.2} parent=5 // pred_fallthru
      _
  $region6: #{_stem.2} parent=0 // loop_footer
    %s14 = sadd.s32 1, %s10
  $region7: #{_stem.2} parent=0 // loop_footer_branch
    %9 = sbr.rel target = $region3
  $region8: #{_stem.2} parent=0 // loop_exit
    _

// kernel: _stem.3
$region0: #{_stem.3}
  #allocation0 [shape = 'u32[]', space=smem, size = 0x4, offset = 0x4, fixed_abs, tag = 'smem constant byte address 0x4 - core index']
  #allocation1 [shape = 'u32[144,128]{1,0:T(1,128)}', space=vmem, size = 0x12000, scoped, tag = 'internal scratch']
  %s0 = inlined_call_operand.vmem [shape: bf16[9,256,128], index: 0, kind: input, shape index: {}]
  %s1 = inlined_call_operand.vmem [shape: bf16[256,128], index: 1, kind: output, shape index: {}]
  %s2 = sld [smem:[#allocation0]]
  $region14: #{_stem.3} parent=0
    _
  %s4 = ssub.s32 1, %s2
  %s5 = scalar_select 0, %s4, %s2
  // Predicated region
  $region2: #{_stem.3} parent=0 // pred_check
    _
  $region3: #{_stem.3} parent=0 // pred_check_branch
    %7 = sbr.rel (0) target = $region5
  $region4: #{_stem.3} parent=0 // pred_region
    _
  $region5: #{_stem.3} parent=0 // pred_fallthru
    _
  %v9 = vld [vmem:[%s0] sm:$0xf]
  %v10 = vld [vmem:[%s0 + $0x4] sm:$0xf]
  %v11 = vld [vmem:[%s0 + $0x8] sm:$0xf]
  %v12 = vld [vmem:[%s0 + $0xc] sm:$0xf]
  %v13 = vld [vmem:[%s0 + $0x10] sm:$0xf]
  %v14 = vld [vmem:[%s0 + $0x14] sm:$0xf]
  %v15 = vld [vmem:[%s0 + $0x18] sm:$0xf]
  %v16 = vld [vmem:[%s0 + $0x1c] sm:$0xf]
  %v17 = vld [vmem:[%s0 + $0x20] sm:$0xf]
  %v18 = vld [vmem:[%s0 + $0x24] sm:$0xf]
  %v19 = vld [vmem:[%s0 + $0x28] sm:$0xf]
  %v20 = vld [vmem:[%s0 + $0x2c] sm:$0xf]
  %v21 = vld [vmem:[%s0 + $0x30] sm:$0xf]
  %v22 = vld [vmem:[%s0 + $0x34] sm:$0xf]
  %v23 = vld [vmem:[%s0 + $0x38] sm:$0xf]
  %v24 = vld [vmem:[%s0 + $0x3c] sm:$0xf]
  %v25 = vld [vmem:[%s0 + $0x40] sm:$0xf]
  %v26 = vld [vmem:[%s0 + $0x44] sm:$0xf]
  %v27 = vld [vmem:[%s0 + $0x48] sm:$0xf]
  %v28 = vld [vmem:[%s0 + $0x4c] sm:$0xf]
  %v29 = vld [vmem:[%s0 + $0x50] sm:$0xf]
  %v30 = vld [vmem:[%s0 + $0x54] sm:$0xf]
  %v31 = vld [vmem:[%s0 + $0x58] sm:$0xf]
  %v32 = vld [vmem:[%s0 + $0x5c] sm:$0xf]
  %v33 = vld [vmem:[%s0 + $0x60] sm:$0xf]
  %v34 = vld [vmem:[%s0 + $0x64] sm:$0xf]
  %v35 = vld [vmem:[%s0 + $0x68] sm:$0xf]
  %v36 = vld [vmem:[%s0 + $0x6c] sm:$0xf]
  %v37 = vld [vmem:[%s0 + $0x70] sm:$0xf]
  %v38 = vld [vmem:[%s0 + $0x74] sm:$0xf]
  %v39 = vld [vmem:[%s0 + $0x78] sm:$0xf]
  %v40 = vld [vmem:[%s0 + $0x7c] sm:$0xf]
  %v41 = vld [vmem:[%s0 + $0x80] sm:$0xf]
  %v42 = vld [vmem:[%s0 + $0x84] sm:$0xf]
  %v43 = vld [vmem:[%s0 + $0x88] sm:$0xf]
  %v44 = vld [vmem:[%s0 + $0x8c] sm:$0xf]
  %v45 = vld [vmem:[%s0 + $0x90] sm:$0xf]
  %v46 = vld [vmem:[%s0 + $0x94] sm:$0xf]
  %v47 = vld [vmem:[%s0 + $0x98] sm:$0xf]
  %v48 = vld [vmem:[%s0 + $0x9c] sm:$0xf]
  %v49 = vld [vmem:[%s0 + $0xa0] sm:$0xf]
  %v50 = vld [vmem:[%s0 + $0xa4] sm:$0xf]
  %v51 = vld [vmem:[%s0 + $0xa8] sm:$0xf]
  %v52 = vld [vmem:[%s0 + $0xac] sm:$0xf]
  %v53 = vld [vmem:[%s0 + $0xb0] sm:$0xf]
  %v54 = vld [vmem:[%s0 + $0xb4] sm:$0xf]
  %v55 = vld [vmem:[%s0 + $0xb8] sm:$0xf]
  %v56 = vld [vmem:[%s0 + $0xbc] sm:$0xf]
  %v57 = vld [vmem:[%s0 + $0xc0] sm:$0xf]
  %v58 = vld [vmem:[%s0 + $0xc4] sm:$0xf]
  %v59 = vld [vmem:[%s0 + $0xc8] sm:$0xf]
  %v60 = vld [vmem:[%s0 + $0xcc] sm:$0xf]
  %v61 = vld [vmem:[%s0 + $0xd0] sm:$0xf]
  %v62 = vld [vmem:[%s0 + $0xd4] sm:$0xf]
  %v63 = vld [vmem:[%s0 + $0xd8] sm:$0xf]
  %v64 = vld [vmem:[%s0 + $0xdc] sm:$0xf]
  %v65 = vld [vmem:[%s0 + $0xe0] sm:$0xf]
  %v66 = vld [vmem:[%s0 + $0xe4] sm:$0xf]
  %v67 = vld [vmem:[%s0 + $0xe8] sm:$0xf]
  %v68 = vld [vmem:[%s0 + $0xec] sm:$0xf]
  %v69 = vld [vmem:[%s0 + $0xf0] sm:$0xf]
  %v70 = vld [vmem:[%s0 + $0xf4] sm:$0xf]
  %v71 = vld [vmem:[%s0 + $0xf8] sm:$0xf]
  %v72 = vld [vmem:[%s0 + $0xfc] sm:$0xf]
  %v73 = vld [vmem:[%s0 + $0x100] sm:$0xf]
  %v74 = vld [vmem:[%s0 + $0x104] sm:$0xf]
  %v75 = vld [vmem:[%s0 + $0x108] sm:$0xf]
  %v76 = vld [vmem:[%s0 + $0x10c] sm:$0xf]
  %v77 = vld [vmem:[%s0 + $0x110] sm:$0xf]
  %v78 = vld [vmem:[%s0 + $0x114] sm:$0xf]
  %v79 = vld [vmem:[%s0 + $0x118] sm:$0xf]
  %v80 = vld [vmem:[%s0 + $0x11c] sm:$0xf]
  %v81 = vld [vmem:[%s0 + $0x120] sm:$0xf]
  %v82 = vld [vmem:[%s0 + $0x124] sm:$0xf]
  %v83 = vld [vmem:[%s0 + $0x128] sm:$0xf]
  %v84 = vld [vmem:[%s0 + $0x12c] sm:$0xf]
  %v85 = vld [vmem:[%s0 + $0x130] sm:$0xf]
  %v86 = vld [vmem:[%s0 + $0x134] sm:$0xf]
  %v87 = vld [vmem:[%s0 + $0x138] sm:$0xf]
  %v88 = vld [vmem:[%s0 + $0x13c] sm:$0xf]
  %v89 = vld [vmem:[%s0 + $0x140] sm:$0xf]
  %v90 = vld [vmem:[%s0 + $0x144] sm:$0xf]
  %v91 = vld [vmem:[%s0 + $0x148] sm:$0xf]
  %v92 = vld [vmem:[%s0 + $0x14c] sm:$0xf]
  %v93 = vld [vmem:[%s0 + $0x150] sm:$0xf]
  %v94 = vld [vmem:[%s0 + $0x154] sm:$0xf]
  %v95 = vld [vmem:[%s0 + $0x158] sm:$0xf]
  %v96 = vld [vmem:[%s0 + $0x15c] sm:$0xf]
  %v97 = vld [vmem:[%s0 + $0x160] sm:$0xf]
  %v98 = vld [vmem:[%s0 + $0x164] sm:$0xf]
  %v99 = vld [vmem:[%s0 + $0x168] sm:$0xf]
  %v100 = vld [vmem:[%s0 + $0x16c] sm:$0xf]
  %v101 = vld [vmem:[%s0 + $0x170] sm:$0xf]
  %v102 = vld [vmem:[%s0 + $0x174] sm:$0xf]
  %v103 = vld [vmem:[%s0 + $0x178] sm:$0xf]
  %v104 = vld [vmem:[%s0 + $0x17c] sm:$0xf]
  %v105 = vld [vmem:[%s0 + $0x180] sm:$0xf]
  %v106 = vld [vmem:[%s0 + $0x184] sm:$0xf]
  %v107 = vld [vmem:[%s0 + $0x188] sm:$0xf]
  %v108 = vld [vmem:[%s0 + $0x18c] sm:$0xf]
  %v109 = vld [vmem:[%s0 + $0x190] sm:$0xf]
  %v110 = vld [vmem:[%s0 + $0x194] sm:$0xf]
  %v111 = vld [vmem:[%s0 + $0x198] sm:$0xf]
  %v112 = vld [vmem:[%s0 + $0x19c] sm:$0xf]
  %v113 = vld [vmem:[%s0 + $0x1a0] sm:$0xf]
  %v114 = vld [vmem:[%s0 + $0x1a4] sm:$0xf]
  %v115 = vld [vmem:[%s0 + $0x1a8] sm:$0xf]
  %v116 = vld [vmem:[%s0 + $0x1ac] sm:$0xf]
  %v117 = vld [vmem:[%s0 + $0x1b0] sm:$0xf]
  %v118 = vld [vmem:[%s0 + $0x1b4] sm:$0xf]
  %v119 = vld [vmem:[%s0 + $0x1b8] sm:$0xf]
  %v120 = vld [vmem:[%s0 + $0x1bc] sm:$0xf]
  %v121 = vld [vmem:[%s0 + $0x1c0] sm:$0xf]
  %v122 = vld [vmem:[%s0 + $0x1c4] sm:$0xf]
  %v123 = vld [vmem:[%s0 + $0x1c8] sm:$0xf]
  %v124 = vld [vmem:[%s0 + $0x1cc] sm:$0xf]
  %v125 = vld [vmem:[%s0 + $0x1d0] sm:$0xf]
  %v126 = vld [vmem:[%s0 + $0x1d4] sm:$0xf]
  %v127 = vld [vmem:[%s0 + $0x1d8] sm:$0xf]
  %v128 = vld [vmem:[%s0 + $0x1dc] sm:$0xf]
  %v129 = vld [vmem:[%s0 + $0x1e0] sm:$0xf]
  %v130 = vld [vmem:[%s0 + $0x1e4] sm:$0xf]
  %v131 = vld [vmem:[%s0 + $0x1e8] sm:$0xf]
  %v132 = vld [vmem:[%s0 + $0x1ec] sm:$0xf]
  %v133 = vld [vmem:[%s0 + $0x1f0] sm:$0xf]
  %v134 = vld [vmem:[%s0 + $0x1f4] sm:$0xf]
  %v135 = vld [vmem:[%s0 + $0x1f8] sm:$0xf]
  %v136 = vld [vmem:[%s0 + $0x1fc] sm:$0xf]
  %v137 = vld [vmem:[%s0 + $0x200] sm:$0xf]
  %v138 = vld [vmem:[%s0 + $0x204] sm:$0xf]
  %v139 = vld [vmem:[%s0 + $0x208] sm:$0xf]
  %v140 = vld [vmem:[%s0 + $0x20c] sm:$0xf]
  %v141 = vld [vmem:[%s0 + $0x210] sm:$0xf]
  %v142 = vld [vmem:[%s0 + $0x214] sm:$0xf]
  %v143 = vld [vmem:[%s0 + $0x218] sm:$0xf]
  %v144 = vld [vmem:[%s0 + $0x21c] sm:$0xf]
  %v145 = vld [vmem:[%s0 + $0x220] sm:$0xf]
  %v146 = vld [vmem:[%s0 + $0x224] sm:$0xf]
  %v147 = vld [vmem:[%s0 + $0x228] sm:$0xf]
  %v148 = vld [vmem:[%s0 + $0x22c] sm:$0xf]
  %v149 = vld [vmem:[%s0 + $0x230] sm:$0xf]
  %v150 = vld [vmem:[%s0 + $0x234] sm:$0xf]
  %v151 = vld [vmem:[%s0 + $0x238] sm:$0xf]
  %v152 = vld [vmem:[%s0 + $0x23c] sm:$0xf]
  %v153 = vld [vmem:[%s0 + $0x240] sm:$0xf]
  %v154 = vld [vmem:[%s0 + $0x244] sm:$0xf]
  %v155 = vld [vmem:[%s0 + $0x248] sm:$0xf]
  %v156 = vld [vmem:[%s0 + $0x24c] sm:$0xf]
  %v157 = vld [vmem:[%s0 + $0x250] sm:$0xf]
  %v158 = vld [vmem:[%s0 + $0x254] sm:$0xf]
  %v159 = vld [vmem:[%s0 + $0x258] sm:$0xf]
  %v160 = vld [vmem:[%s0 + $0x25c] sm:$0xf]
  %v161 = vld [vmem:[%s0 + $0x260] sm:$0xf]
  %v162 = vld [vmem:[%s0 + $0x264] sm:$0xf]
  %v163 = vld [vmem:[%s0 + $0x268] sm:$0xf]
  %v164 = vld [vmem:[%s0 + $0x26c] sm:$0xf]
  %v165 = vld [vmem:[%s0 + $0x270] sm:$0xf]
  %v166 = vld [vmem:[%s0 + $0x274] sm:$0xf]
  %v167 = vld [vmem:[%s0 + $0x278] sm:$0xf]
  %v168 = vld [vmem:[%s0 + $0x27c] sm:$0xf]
  %v169 = vld [vmem:[%s0 + $0x280] sm:$0xf]
  %v170 = vld [vmem:[%s0 + $0x284] sm:$0xf]
  %v171 = vld [vmem:[%s0 + $0x288] sm:$0xf]
  %v172 = vld [vmem:[%s0 + $0x28c] sm:$0xf]
  %v173 = vld [vmem:[%s0 + $0x290] sm:$0xf]
  %v174 = vld [vmem:[%s0 + $0x294] sm:$0xf]
  %v175 = vld [vmem:[%s0 + $0x298] sm:$0xf]
  %v176 = vld [vmem:[%s0 + $0x29c] sm:$0xf]
  %v177 = vld [vmem:[%s0 + $0x2a0] sm:$0xf]
  %v178 = vld [vmem:[%s0 + $0x2a4] sm:$0xf]
  %v179 = vld [vmem:[%s0 + $0x2a8] sm:$0xf]
  %v180 = vld [vmem:[%s0 + $0x2ac] sm:$0xf]
  %v181 = vld [vmem:[%s0 + $0x2b0] sm:$0xf]
  %v182 = vld [vmem:[%s0 + $0x2b4] sm:$0xf]
  %v183 = vld [vmem:[%s0 + $0x2b8] sm:$0xf]
  %v184 = vld [vmem:[%s0 + $0x2bc] sm:$0xf]
  %v185 = vld [vmem:[%s0 + $0x2c0] sm:$0xf]
  %v186 = vld [vmem:[%s0 + $0x2c4] sm:$0xf]
  %v187 = vld [vmem:[%s0 + $0x2c8] sm:$0xf]
  %v188 = vld [vmem:[%s0 + $0x2cc] sm:$0xf]
  %v189 = vld [vmem:[%s0 + $0x2d0] sm:$0xf]
  %v190 = vld [vmem:[%s0 + $0x2d4] sm:$0xf]
  %v191 = vld [vmem:[%s0 + $0x2d8] sm:$0xf]
  %v192 = vld [vmem:[%s0 + $0x2dc] sm:$0xf]
  %v193 = vld [vmem:[%s0 + $0x2e0] sm:$0xf]
  %v194 = vld [vmem:[%s0 + $0x2e4] sm:$0xf]
  %v195 = vld [vmem:[%s0 + $0x2e8] sm:$0xf]
  %v196 = vld [vmem:[%s0 + $0x2ec] sm:$0xf]
  %v197 = vld [vmem:[%s0 + $0x2f0] sm:$0xf]
  %v198 = vld [vmem:[%s0 + $0x2f4] sm:$0xf]
  %v199 = vld [vmem:[%s0 + $0x2f8] sm:$0xf]
  %v200 = vld [vmem:[%s0 + $0x2fc] sm:$0xf]
  %v201 = vld [vmem:[%s0 + $0x300] sm:$0xf]
  %v202 = vld [vmem:[%s0 + $0x304] sm:$0xf]
  %v203 = vld [vmem:[%s0 + $0x308] sm:$0xf]
  %v204 = vld [vmem:[%s0 + $0x30c] sm:$0xf]
  %v205 = vld [vmem:[%s0 + $0x310] sm:$0xf]
  %v206 = vld [vmem:[%s0 + $0x314] sm:$0xf]
  %v207 = vld [vmem:[%s0 + $0x318] sm:$0xf]
  %v208 = vld [vmem:[%s0 + $0x31c] sm:$0xf]
  %v209 = vld [vmem:[%s0 + $0x320] sm:$0xf]
  %v210 = vld [vmem:[%s0 + $0x324] sm:$0xf]
  %v211 = vld [vmem:[%s0 + $0x328] sm:$0xf]
  %v212 = vld [vmem:[%s0 + $0x32c] sm:$0xf]
  %v213 = vld [vmem:[%s0 + $0x330] sm:$0xf]
  %v214 = vld [vmem:[%s0 + $0x334] sm:$0xf]
  %v215 = vld [vmem:[%s0 + $0x338] sm:$0xf]
  %v216 = vld [vmem:[%s0 + $0x33c] sm:$0xf]
  %v217 = vld [vmem:[%s0 + $0x340] sm:$0xf]
  %v218 = vld [vmem:[%s0 + $0x344] sm:$0xf]
  %v219 = vld [vmem:[%s0 + $0x348] sm:$0xf]
  %v220 = vld [vmem:[%s0 + $0x34c] sm:$0xf]
  %v221 = vld [vmem:[%s0 + $0x350] sm:$0xf]
  %v222 = vld [vmem:[%s0 + $0x354] sm:$0xf]
  %v223 = vld [vmem:[%s0 + $0x358] sm:$0xf]
  %v224 = vld [vmem:[%s0 + $0x35c] sm:$0xf]
  %v225 = vld [vmem:[%s0 + $0x360] sm:$0xf]
  %v226 = vld [vmem:[%s0 + $0x364] sm:$0xf]
  %v227 = vld [vmem:[%s0 + $0x368] sm:$0xf]
  %v228 = vld [vmem:[%s0 + $0x36c] sm:$0xf]
  %v229 = vld [vmem:[%s0 + $0x370] sm:$0xf]
  %v230 = vld [vmem:[%s0 + $0x374] sm:$0xf]
  %v231 = vld [vmem:[%s0 + $0x378] sm:$0xf]
  %v232 = vld [vmem:[%s0 + $0x37c] sm:$0xf]
  %v233 = vld [vmem:[%s0 + $0x380] sm:$0xf]
  %v234 = vld [vmem:[%s0 + $0x384] sm:$0xf]
  %v235 = vld [vmem:[%s0 + $0x388] sm:$0xf]
  %v236 = vld [vmem:[%s0 + $0x38c] sm:$0xf]
  %v237 = vld [vmem:[%s0 + $0x390] sm:$0xf]
  %v238 = vld [vmem:[%s0 + $0x394] sm:$0xf]
  %v239 = vld [vmem:[%s0 + $0x398] sm:$0xf]
  %v240 = vld [vmem:[%s0 + $0x39c] sm:$0xf]
  %v241 = vld [vmem:[%s0 + $0x3a0] sm:$0xf]
  %v242 = vld [vmem:[%s0 + $0x3a4] sm:$0xf]
  %v243 = vld [vmem:[%s0 + $0x3a8] sm:$0xf]
  %v244 = vld [vmem:[%s0 + $0x3ac] sm:$0xf]
  %v245 = vld [vmem:[%s0 + $0x3b0] sm:$0xf]
  %v246 = vld [vmem:[%s0 + $0x3b4] sm:$0xf]
  %v247 = vld [vmem:[%s0 + $0x3b8] sm:$0xf]
  %v248 = vld [vmem:[%s0 + $0x3bc] sm:$0xf]
  %v249 = vld [vmem:[%s0 + $0x3c0] sm:$0xf]
  %v250 = vld [vmem:[%s0 + $0x3c4] sm:$0xf]
  %v251 = vld [vmem:[%s0 + $0x3c8] sm:$0xf]
  %v252 = vld [vmem:[%s0 + $0x3cc] sm:$0xf]
  %v253 = vld [vmem:[%s0 + $0x3d0] sm:$0xf]
  %v254 = vld [vmem:[%s0 + $0x3d4] sm:$0xf]
  %v255 = vld [vmem:[%s0 + $0x3d8] sm:$0xf]
  %v256 = vld [vmem:[%s0 + $0x3dc] sm:$0xf]
  %v257 = vld [vmem:[%s0 + $0x3e0] sm:$0xf]
  %v258 = vld [vmem:[%s0 + $0x3e4] sm:$0xf]
  %v259 = vld [vmem:[%s0 + $0x3e8] sm:$0xf]
  %v260 = vld [vmem:[%s0 + $0x3ec] sm:$0xf]
  %v261 = vld [vmem:[%s0 + $0x3f0] sm:$0xf]
  %v262 = vld [vmem:[%s0 + $0x3f4] sm:$0xf]
  %v263 = vld [vmem:[%s0 + $0x3f8] sm:$0xf]
  %v264 = vld [vmem:[%s0 + $0x3fc] sm:$0xf]
  %v265 = vld [vmem:[%s0 + $0x400] sm:$0xf]
  %v266 = vld [vmem:[%s0 + $0x404] sm:$0xf]
  %v267 = vld [vmem:[%s0 + $0x408] sm:$0xf]
  %v268 = vld [vmem:[%s0 + $0x40c] sm:$0xf]
  %v269 = vld [vmem:[%s0 + $0x410] sm:$0xf]
  %v270 = vld [vmem:[%s0 + $0x414] sm:$0xf]
  %v271 = vld [vmem:[%s0 + $0x418] sm:$0xf]
  %v272 = vld [vmem:[%s0 + $0x41c] sm:$0xf]
  %v273 = vld [vmem:[%s0 + $0x420] sm:$0xf]
  %v274 = vld [vmem:[%s0 + $0x424] sm:$0xf]
  %v275 = vld [vmem:[%s0 + $0x428] sm:$0xf]
  %v276 = vld [vmem:[%s0 + $0x42c] sm:$0xf]
  %v277 = vld [vmem:[%s0 + $0x430] sm:$0xf]
  %v278 = vld [vmem:[%s0 + $0x434] sm:$0xf]
  %v279 = vld [vmem:[%s0 + $0x438] sm:$0xf]
  %v280 = vld [vmem:[%s0 + $0x43c] sm:$0xf]
  %v281 = vld [vmem:[%s0 + $0x440] sm:$0xf]
  %v282 = vld [vmem:[%s0 + $0x444] sm:$0xf]
  %v283 = vld [vmem:[%s0 + $0x448] sm:$0xf]
  %v284 = vld [vmem:[%s0 + $0x44c] sm:$0xf]
  %v285 = vld [vmem:[%s0 + $0x450] sm:$0xf]
  %v286 = vld [vmem:[%s0 + $0x454] sm:$0xf]
  %v287 = vld [vmem:[%s0 + $0x458] sm:$0xf]
  %v288 = vld [vmem:[%s0 + $0x45c] sm:$0xf]
  %v289 = vld [vmem:[%s0 + $0x460] sm:$0xf]
  %v290 = vld [vmem:[%s0 + $0x464] sm:$0xf]
  %v291 = vld [vmem:[%s0 + $0x468] sm:$0xf]
  %v292 = vld [vmem:[%s0 + $0x46c] sm:$0xf]
  %v293 = vld [vmem:[%s0 + $0x470] sm:$0xf]
  %v294 = vld [vmem:[%s0 + $0x474] sm:$0xf]
  %v295 = vld [vmem:[%s0 + $0x478] sm:$0xf]
  %v296 = vld [vmem:[%s0 + $0x47c] sm:$0xf]
  %vm297 = vcmask 1043456
  %v300 = vsel %vm297, %v9, 4286644096
  %v303 = vsel %vm297, %v41, 4286644096
  %v305 = vmax.bf16 %v300, %v303
  %v307 = vsel %vm297, %v73, 4286644096
  %v309 = vmax.bf16 %v305, %v307
  %v311 = vsel %vm297, %v105, 4286644096
  %v313 = vmax.bf16 %v309, %v311
  %v315 = vsel %vm297, %v137, 4286644096
  %v317 = vmax.bf16 %v313, %v315
  %v319 = vsel %vm297, %v169, 4286644096
  %v321 = vmax.bf16 %v317, %v319
  %v323 = vsel %vm297, %v201, 4286644096
  %v325 = vmax.bf16 %v321, %v323
  %v327 = vsel %vm297, %v233, 4286644096
  %v329 = vmax.bf16 %v325, %v327
  %v331 = vsel %vm297, %v265, 4286644096
  %v333 = vmax.bf16 %v329, %v331
  %v335 = vsel %vm297, %v10, 4286644096
  %v338 = vsel %vm297, %v42, 4286644096
  %v340 = vmax.bf16 %v335, %v338
  %v342 = vsel %vm297, %v74, 4286644096
  %v344 = vmax.bf16 %v340, %v342
  %v346 = vsel %vm297, %v106, 4286644096
  %v348 = vmax.bf16 %v344, %v346
  %v350 = vsel %vm297, %v138, 4286644096
  %v352 = vmax.bf16 %v348, %v350
  %v354 = vsel %vm297, %v170, 4286644096
  %v356 = vmax.bf16 %v352, %v354
  %v358 = vsel %vm297, %v202, 4286644096
  %v360 = vmax.bf16 %v356, %v358
  %v362 = vsel %vm297, %v234, 4286644096
  %v364 = vmax.bf16 %v360, %v362
  %v366 = vsel %vm297, %v266, 4286644096
  %v368 = vmax.bf16 %v364, %v366
  %v370 = vsel %vm297, %v11, 4286644096
  %v373 = vsel %vm297, %v43, 4286644096
  %v375 = vmax.bf16 %v370, %v373
  %v377 = vsel %vm297, %v75, 4286644096
  %v379 = vmax.bf16 %v375, %v377
  %v381 = vsel %vm297, %v107, 4286644096
  %v383 = vmax.bf16 %v379, %v381
  %v385 = vsel %vm297, %v139, 4286644096
  %v387 = vmax.bf16 %v383, %v385
  %v389 = vsel %vm297, %v171, 4286644096
  %v391 = vmax.bf16 %v387, %v389
  %v393 = vsel %vm297, %v203, 4286644096
  %v395 = vmax.bf16 %v391, %v393
  %v397 = vsel %vm297, %v235, 4286644096
  %v399 = vmax.bf16 %v395, %v397
  %v401 = vsel %vm297, %v267, 4286644096
  %v403 = vmax.bf16 %v399, %v401
  %v405 = vsel %vm297, %v12, 4286644096
  %v408 = vsel %vm297, %v44, 4286644096
  %v410 = vmax.bf16 %v405, %v408
  %v412 = vsel %vm297, %v76, 4286644096
  %v414 = vmax.bf16 %v410, %v412
  %v416 = vsel %vm297, %v108, 4286644096
  %v418 = vmax.bf16 %v414, %v416
  %v420 = vsel %vm297, %v140, 4286644096
  %v422 = vmax.bf16 %v418, %v420
  %v424 = vsel %vm297, %v172, 4286644096
  %v426 = vmax.bf16 %v422, %v424
  %v428 = vsel %vm297, %v204, 4286644096
  %v430 = vmax.bf16 %v426, %v428
  %v432 = vsel %vm297, %v236, 4286644096
  %v434 = vmax.bf16 %v430, %v432
  %v436 = vsel %vm297, %v268, 4286644096
  %v438 = vmax.bf16 %v434, %v436
  %v440 = vsel %vm297, %v13, 4286644096
  %v443 = vsel %vm297, %v45, 4286644096
  %v445 = vmax.bf16 %v440, %v443
  %v447 = vsel %vm297, %v77, 4286644096
  %v449 = vmax.bf16 %v445, %v447
  %v451 = vsel %vm297, %v109, 4286644096
  %v453 = vmax.bf16 %v449, %v451
  %v455 = vsel %vm297, %v141, 4286644096
  %v457 = vmax.bf16 %v453, %v455
  %v459 = vsel %vm297, %v173, 4286644096
  %v461 = vmax.bf16 %v457, %v459
  %v463 = vsel %vm297, %v205, 4286644096
  %v465 = vmax.bf16 %v461, %v463
  %v467 = vsel %vm297, %v237, 4286644096
  %v469 = vmax.bf16 %v465, %v467
  %v471 = vsel %vm297, %v269, 4286644096
  %v473 = vmax.bf16 %v469, %v471
  %v475 = vsel %vm297, %v14, 4286644096
  %v478 = vsel %vm297, %v46, 4286644096
  %v480 = vmax.bf16 %v475, %v478
  %v482 = vsel %vm297, %v78, 4286644096
  %v484 = vmax.bf16 %v480, %v482
  %v486 = vsel %vm297, %v110, 4286644096
  %v488 = vmax.bf16 %v484, %v486
  %v490 = vsel %vm297, %v142, 4286644096
  %v492 = vmax.bf16 %v488, %v490
  %v494 = vsel %vm297, %v174, 4286644096
  %v496 = vmax.bf16 %v492, %v494
  %v498 = vsel %vm297, %v206, 4286644096
  %v500 = vmax.bf16 %v496, %v498
  %v502 = vsel %vm297, %v238, 4286644096
  %v504 = vmax.bf16 %v500, %v502
  %v506 = vsel %vm297, %v270, 4286644096
  %v508 = vmax.bf16 %v504, %v506
  %v510 = vsel %vm297, %v15, 4286644096
  %v513 = vsel %vm297, %v47, 4286644096
  %v515 = vmax.bf16 %v510, %v513
  %v517 = vsel %vm297, %v79, 4286644096
  %v519 = vmax.bf16 %v515, %v517
  %v521 = vsel %vm297, %v111, 4286644096
  %v523 = vmax.bf16 %v519, %v521
  %v525 = vsel %vm297, %v143, 4286644096
  %v527 = vmax.bf16 %v523, %v525
  %v529 = vsel %vm297, %v175, 4286644096
  %v531 = vmax.bf16 %v527, %v529
  %v533 = vsel %vm297, %v207, 4286644096
  %v535 = vmax.bf16 %v531, %v533
  %v537 = vsel %vm297, %v239, 4286644096
  %v539 = vmax.bf16 %v535, %v537
  %v541 = vsel %vm297, %v271, 4286644096
  %v543 = vmax.bf16 %v539, %v541
  %v545 = vsel %vm297, %v16, 4286644096
  %v548 = vsel %vm297, %v48, 4286644096
  %v550 = vmax.bf16 %v545, %v548
  %v552 = vsel %vm297, %v80, 4286644096
  %v554 = vmax.bf16 %v550, %v552
  %v556 = vsel %vm297, %v112, 4286644096
  %v558 = vmax.bf16 %v554, %v556
  %v560 = vsel %vm297, %v144, 4286644096
  %v562 = vmax.bf16 %v558, %v560
  %v564 = vsel %vm297, %v176, 4286644096
  %v566 = vmax.bf16 %v562, %v564
  %v568 = vsel %vm297, %v208, 4286644096
  %v570 = vmax.bf16 %v566, %v568
  %v572 = vsel %vm297, %v240, 4286644096
  %v574 = vmax.bf16 %v570, %v572
  %v576 = vsel %vm297, %v272, 4286644096
  %v578 = vmax.bf16 %v574, %v576
  %v580 = vsel %vm297, %v17, 4286644096
  %v583 = vsel %vm297, %v49, 4286644096
  %v585 = vmax.bf16 %v580, %v583
  %v587 = vsel %vm297, %v81, 4286644096
  %v589 = vmax.bf16 %v585, %v587
  %v591 = vsel %vm297, %v113, 4286644096
  %v593 = vmax.bf16 %v589, %v591
  %v595 = vsel %vm297, %v145, 4286644096
  %v597 = vmax.bf16 %v593, %v595
  %v599 = vsel %vm297, %v177, 4286644096
  %v601 = vmax.bf16 %v597, %v599
  %v603 = vsel %vm297, %v209, 4286644096
  %v605 = vmax.bf16 %v601, %v603
  %v607 = vsel %vm297, %v241, 4286644096
  %v609 = vmax.bf16 %v605, %v607
  %v611 = vsel %vm297, %v273, 4286644096
  %v613 = vmax.bf16 %v609, %v611
  %v615 = vsel %vm297, %v18, 4286644096
  %v618 = vsel %vm297, %v50, 4286644096
  %v620 = vmax.bf16 %v615, %v618
  %v622 = vsel %vm297, %v82, 4286644096
  %v624 = vmax.bf16 %v620, %v622
  %v626 = vsel %vm297, %v114, 4286644096
  %v628 = vmax.bf16 %v624, %v626
  %v630 = vsel %vm297, %v146, 4286644096
  %v632 = vmax.bf16 %v628, %v630
  %v634 = vsel %vm297, %v178, 4286644096
  %v636 = vmax.bf16 %v632, %v634
  %v638 = vsel %vm297, %v210, 4286644096
  %v640 = vmax.bf16 %v636, %v638
  %v642 = vsel %vm297, %v242, 4286644096
  %v644 = vmax.bf16 %v640, %v642
  %v646 = vsel %vm297, %v274, 4286644096
  %v648 = vmax.bf16 %v644, %v646
  %v650 = vsel %vm297, %v19, 4286644096
  %v653 = vsel %vm297, %v51, 4286644096
  %v655 = vmax.bf16 %v650, %v653
  %v657 = vsel %vm297, %v83, 4286644096
  %v659 = vmax.bf16 %v655, %v657
  %v661 = vsel %vm297, %v115, 4286644096
  %v663 = vmax.bf16 %v659, %v661
  %v665 = vsel %vm297, %v147, 4286644096
  %v667 = vmax.bf16 %v663, %v665
  %v669 = vsel %vm297, %v179, 4286644096
  %v671 = vmax.bf16 %v667, %v669
  %v673 = vsel %vm297, %v211, 4286644096
  %v675 = vmax.bf16 %v671, %v673
  %v677 = vsel %vm297, %v243, 4286644096
  %v679 = vmax.bf16 %v675, %v677
  %v681 = vsel %vm297, %v275, 4286644096
  %v683 = vmax.bf16 %v679, %v681
  %v685 = vsel %vm297, %v20, 4286644096
  %v688 = vsel %vm297, %v52, 4286644096
  %v690 = vmax.bf16 %v685, %v688
  %v692 = vsel %vm297, %v84, 4286644096
  %v694 = vmax.bf16 %v690, %v692
  %v696 = vsel %vm297, %v116, 4286644096
  %v698 = vmax.bf16 %v694, %v696
  %v700 = vsel %vm297, %v148, 4286644096
  %v702 = vmax.bf16 %v698, %v700
  %v704 = vsel %vm297, %v180, 4286644096
  %v706 = vmax.bf16 %v702, %v704
  %v708 = vsel %vm297, %v212, 4286644096
  %v710 = vmax.bf16 %v706, %v708
  %v712 = vsel %vm297, %v244, 4286644096
  %v714 = vmax.bf16 %v710, %v712
  %v716 = vsel %vm297, %v276, 4286644096
  %v718 = vmax.bf16 %v714, %v716
  %v720 = vsel %vm297, %v21, 4286644096
  %v723 = vsel %vm297, %v53, 4286644096
  %v725 = vmax.bf16 %v720, %v723
  %v727 = vsel %vm297, %v85, 4286644096
  %v729 = vmax.bf16 %v725, %v727
  %v731 = vsel %vm297, %v117, 4286644096
  %v733 = vmax.bf16 %v729, %v731
  %v735 = vsel %vm297, %v149, 4286644096
  %v737 = vmax.bf16 %v733, %v735
  %v739 = vsel %vm297, %v181, 4286644096
  %v741 = vmax.bf16 %v737, %v739
  %v743 = vsel %vm297, %v213, 4286644096
  %v745 = vmax.bf16 %v741, %v743
  %v747 = vsel %vm297, %v245, 4286644096
  %v749 = vmax.bf16 %v745, %v747
  %v751 = vsel %vm297, %v277, 4286644096
  %v753 = vmax.bf16 %v749, %v751
  %v755 = vsel %vm297, %v22, 4286644096
  %v758 = vsel %vm297, %v54, 4286644096
  %v760 = vmax.bf16 %v755, %v758
  %v762 = vsel %vm297, %v86, 4286644096
  %v764 = vmax.bf16 %v760, %v762
  %v766 = vsel %vm297, %v118, 4286644096
  %v768 = vmax.bf16 %v764, %v766
  %v770 = vsel %vm297, %v150, 4286644096
  %v772 = vmax.bf16 %v768, %v770
  %v774 = vsel %vm297, %v182, 4286644096
  %v776 = vmax.bf16 %v772, %v774
  %v778 = vsel %vm297, %v214, 4286644096
  %v780 = vmax.bf16 %v776, %v778
  %v782 = vsel %vm297, %v246, 4286644096
  %v784 = vmax.bf16 %v780, %v782
  %v786 = vsel %vm297, %v278, 4286644096
  %v788 = vmax.bf16 %v784, %v786
  %v790 = vsel %vm297, %v23, 4286644096
  %v793 = vsel %vm297, %v55, 4286644096
  %v795 = vmax.bf16 %v790, %v793
  %v797 = vsel %vm297, %v87, 4286644096
  %v799 = vmax.bf16 %v795, %v797
  %v801 = vsel %vm297, %v119, 4286644096
  %v803 = vmax.bf16 %v799, %v801
  %v805 = vsel %vm297, %v151, 4286644096
  %v807 = vmax.bf16 %v803, %v805
  %v809 = vsel %vm297, %v183, 4286644096
  %v811 = vmax.bf16 %v807, %v809
  %v813 = vsel %vm297, %v215, 4286644096
  %v815 = vmax.bf16 %v811, %v813
  %v817 = vsel %vm297, %v247, 4286644096
  %v819 = vmax.bf16 %v815, %v817
  %v821 = vsel %vm297, %v279, 4286644096
  %v823 = vmax.bf16 %v819, %v821
  %v825 = vsel %vm297, %v24, 4286644096
  %v828 = vsel %vm297, %v56, 4286644096
  %v830 = vmax.bf16 %v825, %v828
  %v832 = vsel %vm297, %v88, 4286644096
  %v834 = vmax.bf16 %v830, %v832
  %v836 = vsel %vm297, %v120, 4286644096
  %v838 = vmax.bf16 %v834, %v836
  %v840 = vsel %vm297, %v152, 4286644096
  %v842 = vmax.bf16 %v838, %v840
  %v844 = vsel %vm297, %v184, 4286644096
  %v846 = vmax.bf16 %v842, %v844
  %v848 = vsel %vm297, %v216, 4286644096
  %v850 = vmax.bf16 %v846, %v848
  %v852 = vsel %vm297, %v248, 4286644096
  %v854 = vmax.bf16 %v850, %v852
  %v856 = vsel %vm297, %v280, 4286644096
  %v858 = vmax.bf16 %v854, %v856
  %v860 = vsel %vm297, %v25, 4286644096
  %v863 = vsel %vm297, %v57, 4286644096
  %v865 = vmax.bf16 %v860, %v863
  %v867 = vsel %vm297, %v89, 4286644096
  %v869 = vmax.bf16 %v865, %v867
  %v871 = vsel %vm297, %v121, 4286644096
  %v873 = vmax.bf16 %v869, %v871
  %v875 = vsel %vm297, %v153, 4286644096
  %v877 = vmax.bf16 %v873, %v875
  %v879 = vsel %vm297, %v185, 4286644096
  %v881 = vmax.bf16 %v877, %v879
  %v883 = vsel %vm297, %v217, 4286644096
  %v885 = vmax.bf16 %v881, %v883
  %v887 = vsel %vm297, %v249, 4286644096
  %v889 = vmax.bf16 %v885, %v887
  %v891 = vsel %vm297, %v281, 4286644096
  %v893 = vmax.bf16 %v889, %v891
  %v895 = vsel %vm297, %v26, 4286644096
  %v898 = vsel %vm297, %v58, 4286644096
  %v900 = vmax.bf16 %v895, %v898
  %v902 = vsel %vm297, %v90, 4286644096
  %v904 = vmax.bf16 %v900, %v902
  %v906 = vsel %vm297, %v122, 4286644096
  %v908 = vmax.bf16 %v904, %v906
  %v910 = vsel %vm297, %v154, 4286644096
  %v912 = vmax.bf16 %v908, %v910
  %v914 = vsel %vm297, %v186, 4286644096
  %v916 = vmax.bf16 %v912, %v914
  %v918 = vsel %vm297, %v218, 4286644096
  %v920 = vmax.bf16 %v916, %v918
  %v922 = vsel %vm297, %v250, 4286644096
  %v924 = vmax.bf16 %v920, %v922
  %v926 = vsel %vm297, %v282, 4286644096
  %v928 = vmax.bf16 %v924, %v926
  %v930 = vsel %vm297, %v27, 4286644096
  %v933 = vsel %vm297, %v59, 4286644096
  %v935 = vmax.bf16 %v930, %v933
  %v937 = vsel %vm297, %v91, 4286644096
  %v939 = vmax.bf16 %v935, %v937
  %v941 = vsel %vm297, %v123, 4286644096
  %v943 = vmax.bf16 %v939, %v941
  %v945 = vsel %vm297, %v155, 4286644096
  %v947 = vmax.bf16 %v943, %v945
  %v949 = vsel %vm297, %v187, 4286644096
  %v951 = vmax.bf16 %v947, %v949
  %v953 = vsel %vm297, %v219, 4286644096
  %v955 = vmax.bf16 %v951, %v953
  %v957 = vsel %vm297, %v251, 4286644096
  %v959 = vmax.bf16 %v955, %v957
  %v961 = vsel %vm297, %v283, 4286644096
  %v963 = vmax.bf16 %v959, %v961
  %v965 = vsel %vm297, %v28, 4286644096
  %v968 = vsel %vm297, %v60, 4286644096
  %v970 = vmax.bf16 %v965, %v968
  %v972 = vsel %vm297, %v92, 4286644096
  %v974 = vmax.bf16 %v970, %v972
  %v976 = vsel %vm297, %v124, 4286644096
  %v978 = vmax.bf16 %v974, %v976
  %v980 = vsel %vm297, %v156, 4286644096
  %v982 = vmax.bf16 %v978, %v980
  %v984 = vsel %vm297, %v188, 4286644096
  %v986 = vmax.bf16 %v982, %v984
  %v988 = vsel %vm297, %v220, 4286644096
  %v990 = vmax.bf16 %v986, %v988
  %v992 = vsel %vm297, %v252, 4286644096
  %v994 = vmax.bf16 %v990, %v992
  %v996 = vsel %vm297, %v284, 4286644096
  %v998 = vmax.bf16 %v994, %v996
  %v1000 = vsel %vm297, %v29, 4286644096
  %v1003 = vsel %vm297, %v61, 4286644096
  %v1005 = vmax.bf16 %v1000, %v1003
  %v1007 = vsel %vm297, %v93, 4286644096
  %v1009 = vmax.bf16 %v1005, %v1007
  %v1011 = vsel %vm297, %v125, 4286644096
  %v1013 = vmax.bf16 %v1009, %v1011
  %v1015 = vsel %vm297, %v157, 4286644096
  %v1017 = vmax.bf16 %v1013, %v1015
  %v1019 = vsel %vm297, %v189, 4286644096
  %v1021 = vmax.bf16 %v1017, %v1019
  %v1023 = vsel %vm297, %v221, 4286644096
  %v1025 = vmax.bf16 %v1021, %v1023
  %v1027 = vsel %vm297, %v253, 4286644096
  %v1029 = vmax.bf16 %v1025, %v1027
  %v1031 = vsel %vm297, %v285, 4286644096
  %v1033 = vmax.bf16 %v1029, %v1031
  %v1035 = vsel %vm297, %v30, 4286644096
  %v1038 = vsel %vm297, %v62, 4286644096
  %v1040 = vmax.bf16 %v1035, %v1038
  %v1042 = vsel %vm297, %v94, 4286644096
  %v1044 = vmax.bf16 %v1040, %v1042
  %v1046 = vsel %vm297, %v126, 4286644096
  %v1048 = vmax.bf16 %v1044, %v1046
  %v1050 = vsel %vm297, %v158, 4286644096
  %v1052 = vmax.bf16 %v1048, %v1050
  %v1054 = vsel %vm297, %v190, 4286644096
  %v1056 = vmax.bf16 %v1052, %v1054
  %v1058 = vsel %vm297, %v222, 4286644096
  %v1060 = vmax.bf16 %v1056, %v1058
  %v1062 = vsel %vm297, %v254, 4286644096
  %v1064 = vmax.bf16 %v1060, %v1062
  %v1066 = vsel %vm297, %v286, 4286644096
  %v1068 = vmax.bf16 %v1064, %v1066
  %v1070 = vsel %vm297, %v31, 4286644096
  %v1073 = vsel %vm297, %v63, 4286644096
  %v1075 = vmax.bf16 %v1070, %v1073
  %v1077 = vsel %vm297, %v95, 4286644096
  %v1079 = vmax.bf16 %v1075, %v1077
  %v1081 = vsel %vm297, %v127, 4286644096
  %v1083 = vmax.bf16 %v1079, %v1081
  %v1085 = vsel %vm297, %v159, 4286644096
  %v1087 = vmax.bf16 %v1083, %v1085
  %v1089 = vsel %vm297, %v191, 4286644096
  %v1091 = vmax.bf16 %v1087, %v1089
  %v1093 = vsel %vm297, %v223, 4286644096
  %v1095 = vmax.bf16 %v1091, %v1093
  %v1097 = vsel %vm297, %v255, 4286644096
  %v1099 = vmax.bf16 %v1095, %v1097
  %v1101 = vsel %vm297, %v287, 4286644096
  %v1103 = vmax.bf16 %v1099, %v1101
  %v1105 = vsel %vm297, %v32, 4286644096
  %v1108 = vsel %vm297, %v64, 4286644096
  %v1110 = vmax.bf16 %v1105, %v1108
  %v1112 = vsel %vm297, %v96, 4286644096
  %v1114 = vmax.bf16 %v1110, %v1112
  %v1116 = vsel %vm297, %v128, 4286644096
  %v1118 = vmax.bf16 %v1114, %v1116
  %v1120 = vsel %vm297, %v160, 4286644096
  %v1122 = vmax.bf16 %v1118, %v1120
  %v1124 = vsel %vm297, %v192, 4286644096
  %v1126 = vmax.bf16 %v1122, %v1124
  %v1128 = vsel %vm297, %v224, 4286644096
  %v1130 = vmax.bf16 %v1126, %v1128
  %v1132 = vsel %vm297, %v256, 4286644096
  %v1134 = vmax.bf16 %v1130, %v1132
  %v1136 = vsel %vm297, %v288, 4286644096
  %v1138 = vmax.bf16 %v1134, %v1136
  %v1140 = vsel %vm297, %v33, 4286644096
  %v1143 = vsel %vm297, %v65, 4286644096
  %v1145 = vmax.bf16 %v1140, %v1143
  %v1147 = vsel %vm297, %v97, 4286644096
  %v1149 = vmax.bf16 %v1145, %v1147
  %v1151 = vsel %vm297, %v129, 4286644096
  %v1153 = vmax.bf16 %v1149, %v1151
  %v1155 = vsel %vm297, %v161, 4286644096
  %v1157 = vmax.bf16 %v1153, %v1155
  %v1159 = vsel %vm297, %v193, 4286644096
  %v1161 = vmax.bf16 %v1157, %v1159
  %v1163 = vsel %vm297, %v225, 4286644096
  %v1165 = vmax.bf16 %v1161, %v1163
  %v1167 = vsel %vm297, %v257, 4286644096
  %v1169 = vmax.bf16 %v1165, %v1167
  %v1171 = vsel %vm297, %v289, 4286644096
  %v1173 = vmax.bf16 %v1169, %v1171
  %v1175 = vsel %vm297, %v34, 4286644096
  %v1178 = vsel %vm297, %v66, 4286644096
  %v1180 = vmax.bf16 %v1175, %v1178
  %v1182 = vsel %vm297, %v98, 4286644096
  %v1184 = vmax.bf16 %v1180, %v1182
  %v1186 = vsel %vm297, %v130, 4286644096
  %v1188 = vmax.bf16 %v1184, %v1186
  %v1190 = vsel %vm297, %v162, 4286644096
  %v1192 = vmax.bf16 %v1188, %v1190
  %v1194 = vsel %vm297, %v194, 4286644096
  %v1196 = vmax.bf16 %v1192, %v1194
  %v1198 = vsel %vm297, %v226, 4286644096
  %v1200 = vmax.bf16 %v1196, %v1198
  %v1202 = vsel %vm297, %v258, 4286644096
  %v1204 = vmax.bf16 %v1200, %v1202
  %v1206 = vsel %vm297, %v290, 4286644096
  %v1208 = vmax.bf16 %v1204, %v1206
  %v1210 = vsel %vm297, %v35, 4286644096
  %v1213 = vsel %vm297, %v67, 4286644096
  %v1215 = vmax.bf16 %v1210, %v1213
  %v1217 = vsel %vm297, %v99, 4286644096
  %v1219 = vmax.bf16 %v1215, %v1217
  %v1221 = vsel %vm297, %v131, 4286644096
  %v1223 = vmax.bf16 %v1219, %v1221
  %v1225 = vsel %vm297, %v163, 4286644096
  %v1227 = vmax.bf16 %v1223, %v1225
  %v1229 = vsel %vm297, %v195, 4286644096
  %v1231 = vmax.bf16 %v1227, %v1229
  %v1233 = vsel %vm297, %v227, 4286644096
  %v1235 = vmax.bf16 %v1231, %v1233
  %v1237 = vsel %vm297, %v259, 4286644096
  %v1239 = vmax.bf16 %v1235, %v1237
  %v1241 = vsel %vm297, %v291, 4286644096
  %v1243 = vmax.bf16 %v1239, %v1241
  %v1245 = vsel %vm297, %v36, 4286644096
  %v1248 = vsel %vm297, %v68, 4286644096
  %v1250 = vmax.bf16 %v1245, %v1248
  %v1252 = vsel %vm297, %v100, 4286644096
  %v1254 = vmax.bf16 %v1250, %v1252
  %v1256 = vsel %vm297, %v132, 4286644096
  %v1258 = vmax.bf16 %v1254, %v1256
  %v1260 = vsel %vm297, %v164, 4286644096
  %v1262 = vmax.bf16 %v1258, %v1260
  %v1264 = vsel %vm297, %v196, 4286644096
  %v1266 = vmax.bf16 %v1262, %v1264
  %v1268 = vsel %vm297, %v228, 4286644096
  %v1270 = vmax.bf16 %v1266, %v1268
  %v1272 = vsel %vm297, %v260, 4286644096
  %v1274 = vmax.bf16 %v1270, %v1272
  %v1276 = vsel %vm297, %v292, 4286644096
  %v1278 = vmax.bf16 %v1274, %v1276
  %v1280 = vsel %vm297, %v37, 4286644096
  %v1283 = vsel %vm297, %v69, 4286644096
  %v1285 = vmax.bf16 %v1280, %v1283
  %v1287 = vsel %vm297, %v101, 4286644096
  %v1289 = vmax.bf16 %v1285, %v1287
  %v1291 = vsel %vm297, %v133, 4286644096
  %v1293 = vmax.bf16 %v1289, %v1291
  %v1295 = vsel %vm297, %v165, 4286644096
  %v1297 = vmax.bf16 %v1293, %v1295
  %v1299 = vsel %vm297, %v197, 4286644096
  %v1301 = vmax.bf16 %v1297, %v1299
  %v1303 = vsel %vm297, %v229, 4286644096
  %v1305 = vmax.bf16 %v1301, %v1303
  %v1307 = vsel %vm297, %v261, 4286644096
  %v1309 = vmax.bf16 %v1305, %v1307
  %v1311 = vsel %vm297, %v293, 4286644096
  %v1313 = vmax.bf16 %v1309, %v1311
  %v1315 = vsel %vm297, %v38, 4286644096
  %v1318 = vsel %vm297, %v70, 4286644096
  %v1320 = vmax.bf16 %v1315, %v1318
  %v1322 = vsel %vm297, %v102, 4286644096
  %v1324 = vmax.bf16 %v1320, %v1322
  %v1326 = vsel %vm297, %v134, 4286644096
  %v1328 = vmax.bf16 %v1324, %v1326
  %v1330 = vsel %vm297, %v166, 4286644096
  %v1332 = vmax.bf16 %v1328, %v1330
  %v1334 = vsel %vm297, %v198, 4286644096
  %v1336 = vmax.bf16 %v1332, %v1334
  %v1338 = vsel %vm297, %v230, 4286644096
  %v1340 = vmax.bf16 %v1336, %v1338
  %v1342 = vsel %vm297, %v262, 4286644096
  %v1344 = vmax.bf16 %v1340, %v1342
  %v1346 = vsel %vm297, %v294, 4286644096
  %v1348 = vmax.bf16 %v1344, %v1346
  %v1350 = vsel %vm297, %v39, 4286644096
  %v1353 = vsel %vm297, %v71, 4286644096
  %v1355 = vmax.bf16 %v1350, %v1353
  %v1357 = vsel %vm297, %v103, 4286644096
  %v1359 = vmax.bf16 %v1355, %v1357
  %v1361 = vsel %vm297, %v135, 4286644096
  %v1363 = vmax.bf16 %v1359, %v1361
  %v1365 = vsel %vm297, %v167, 4286644096
  %v1367 = vmax.bf16 %v1363, %v1365
  %v1369 = vsel %vm297, %v199, 4286644096
  %v1371 = vmax.bf16 %v1367, %v1369
  %v1373 = vsel %vm297, %v231, 4286644096
  %v1375 = vmax.bf16 %v1371, %v1373
  %v1377 = vsel %vm297, %v263, 4286644096
  %v1379 = vmax.bf16 %v1375, %v1377
  %v1381 = vsel %vm297, %v295, 4286644096
  %v1383 = vmax.bf16 %v1379, %v1381
  %v1385 = vsel %vm297, %v40, 4286644096
  %v1388 = vsel %vm297, %v72, 4286644096
  %v1390 = vmax.bf16 %v1385, %v1388
  %v1392 = vsel %vm297, %v104, 4286644096
  %v1394 = vmax.bf16 %v1390, %v1392
  %v1396 = vsel %vm297, %v136, 4286644096
  %v1398 = vmax.bf16 %v1394, %v1396
  %v1400 = vsel %vm297, %v168, 4286644096
  %v1402 = vmax.bf16 %v1398, %v1400
  %v1404 = vsel %vm297, %v200, 4286644096
  %v1406 = vmax.bf16 %v1402, %v1404
  %v1408 = vsel %vm297, %v232, 4286644096
  %v1410 = vmax.bf16 %v1406, %v1408
  %v1412 = vsel %vm297, %v264, 4286644096
  %v1414 = vmax.bf16 %v1410, %v1412
  %v1416 = vsel %vm297, %v296, 4286644096
  %v1418 = vmax.bf16 %v1414, %v1416
  %1419 = vst [vmem:[%s1] sm:$0xf] %v333
  %1420 = vst [vmem:[%s1 + $0x4] sm:$0xf] %v368
  %1421 = vst [vmem:[%s1 + $0x8] sm:$0xf] %v403
  %1422 = vst [vmem:[%s1 + $0xc] sm:$0xf] %v438
  %1423 = vst [vmem:[%s1 + $0x10] sm:$0xf] %v473
  %1424 = vst [vmem:[%s1 + $0x14] sm:$0xf] %v508
  %1425 = vst [vmem:[%s1 + $0x18] sm:$0xf] %v543
  %1426 = vst [vmem:[%s1 + $0x1c] sm:$0xf] %v578
  %1427 = vst [vmem:[%s1 + $0x20] sm:$0xf] %v613
  %1428 = vst [vmem:[%s1 + $0x24] sm:$0xf] %v648
  %1429 = vst [vmem:[%s1 + $0x28] sm:$0xf] %v683
  %1430 = vst [vmem:[%s1 + $0x2c] sm:$0xf] %v718
  %1431 = vst [vmem:[%s1 + $0x30] sm:$0xf] %v753
  %1432 = vst [vmem:[%s1 + $0x34] sm:$0xf] %v788
  %1433 = vst [vmem:[%s1 + $0x38] sm:$0xf] %v823
  %1434 = vst [vmem:[%s1 + $0x3c] sm:$0xf] %v858
  %1435 = vst [vmem:[%s1 + $0x40] sm:$0xf] %v893
  %1436 = vst [vmem:[%s1 + $0x44] sm:$0xf] %v928
  %1437 = vst [vmem:[%s1 + $0x48] sm:$0xf] %v963
  %1438 = vst [vmem:[%s1 + $0x4c] sm:$0xf] %v998
  %1439 = vst [vmem:[%s1 + $0x50] sm:$0xf] %v1033
  %1440 = vst [vmem:[%s1 + $0x54] sm:$0xf] %v1068
  %1441 = vst [vmem:[%s1 + $0x58] sm:$0xf] %v1103
  %1442 = vst [vmem:[%s1 + $0x5c] sm:$0xf] %v1138
  %1443 = vst [vmem:[%s1 + $0x60] sm:$0xf] %v1173
  %1444 = vst [vmem:[%s1 + $0x64] sm:$0xf] %v1208
  %1445 = vst [vmem:[%s1 + $0x68] sm:$0xf] %v1243
  %1446 = vst [vmem:[%s1 + $0x6c] sm:$0xf] %v1278
  %1447 = vst [vmem:[%s1 + $0x70] sm:$0xf] %v1313
  %1448 = vst [vmem:[%s1 + $0x74] sm:$0xf] %v1348
  %1449 = vst [vmem:[%s1 + $0x78] sm:$0xf] %v1383
  %1450 = vst [vmem:[%s1 + $0x7c] sm:$0xf] %v1418
  // Predicated region
  $region6: #{_stem.3} parent=0 // pred_check
    _
  $region7: #{_stem.3} parent=0 // pred_check_branch
    %1452 = sbr.rel (0) target = $region9
  $region8: #{_stem.3} parent=0 // pred_region
    _
  $region9: #{_stem.3} parent=0 // pred_fallthru
    _
  // Predicated region
  $region10: #{_stem.3} parent=0 // pred_check
    _
  $region11: #{_stem.3} parent=0 // pred_check_branch
    %1454 = sbr.rel (0) target = $region13
  $region12: #{_stem.3} parent=0 // pred_region
    _
  $region13: #{_stem.3} parent=0 // pred_fallthru
    _

</llo_original>
